<compile_context>
chip_gen: v7x
topology: tpu7x:2x2x1
jax: 0.10.0
libtpu: 0.0.40
codegen_flags: <defaults>
</compile_context>

<pallas_src>
import functools

import jax
import jax.numpy as jnp
from jax.experimental import pallas as pl
from jax.experimental.pallas import tpu as pltpu


def _round_up(x, m):
    return ((x + m - 1) // m) * m


def encoder_kernel(x_ref, wh_ref, bh_ref, whd_ref, bhd_ref, out_ref, *, z_dim):
    # hidden = relu(x @ W_h + b_h)   -- MXU matmul, f32 accumulation
    h = jnp.dot(x_ref[...], wh_ref[...], preferred_element_type=jnp.float32)
    h = jnp.maximum(h + bh_ref[...], 0.0)

    # Fused head: columns [0, z) = mean, [z, 2z) = std, [2z, Zp) = zero pad.
    head = (
        jnp.dot(h, whd_ref[...], preferred_element_type=jnp.float32)
        + bhd_ref[...]
    )
    # ReLU only on the std half; padding columns are exactly zero already.
    col = jax.lax.broadcasted_iota(jnp.int32, head.shape, 1)
    out_ref[...] = jnp.where(col >= z_dim, jnp.maximum(head, 0.0), head)


@functools.partial(jax.jit, static_argnames=("batch_tile",))
def encoder_forward(x, w_h, b_h, w_m, b_m, w_s, b_s, *, batch_tile=None):
    B, D_in = x.shape
    H = w_h.shape[1]
    Z = w_m.shape[1]

    # Tile the batch: whole (sublane-rounded) batch for small B, 128 otherwise
    # (>=2 parallel programs on big batches shards across v7x's two TCs).
    if batch_tile is None:
        batch_tile = min(128, _round_up(B, 8))
    Bp = _round_up(B, batch_tile)

    # Pad feature dims to full 128-lane vregs (zero padding is exact).
    Dp = _round_up(D_in, 128)
    Hp = _round_up(H, 128)
    Zp = _round_up(2 * Z, 128)  # fused [mean | std] head, lane-dense output

    x_p = jnp.zeros((Bp, Dp), jnp.float32).at[:B, :D_in].set(x)
    wh_p = jnp.zeros((Dp, Hp), jnp.float32).at[:D_in, :H].set(w_h)
    bh_p = jnp.zeros((1, Hp), jnp.float32).at[0, :H].set(b_h)
    whd_p = (
        jnp.zeros((Hp, Zp), jnp.float32)
        .at[:H, :Z].set(w_m)
        .at[:H, Z:2 * Z].set(w_s)
    )
    bhd_p = (
        jnp.zeros((1, Zp), jnp.float32)
        .at[0, :Z].set(b_m)
        .at[0, Z:2 * Z].set(b_s)
    )

    grid = (Bp // batch_tile,)
    flops = 2 * Bp * Dp * Hp + 2 * Bp * Hp * Zp
    bytes_accessed = 4 * (Bp * Dp + Dp * Hp + Hp + Hp * Zp + Zp + Bp * Zp)

    fused = pl.pallas_call(
        functools.partial(encoder_kernel, z_dim=Z),
        out_shape=jax.ShapeDtypeStruct((Bp, Zp), jnp.float32),
        grid_spec=pltpu.PrefetchScalarGridSpec(
            num_scalar_prefetch=0,
            grid=grid,
            in_specs=[
                pl.BlockSpec((batch_tile, Dp), lambda i: (i, 0)),  # x tile
                pl.BlockSpec((Dp, Hp), lambda i: (0, 0)),          # W_h (full)
                pl.BlockSpec((1, Hp), lambda i: (0, 0)),           # b_h
                pl.BlockSpec((Hp, Zp), lambda i: (0, 0)),          # [W_m|W_s]
                pl.BlockSpec((1, Zp), lambda i: (0, 0)),           # [b_m|b_s]
            ],
            out_specs=pl.BlockSpec((batch_tile, Zp), lambda i: (i, 0)),
        ),
        compiler_params=pltpu.CompilerParams(
            dimension_semantics=("parallel",),
        ),
        cost_estimate=pl.CostEstimate(
            flops=flops, transcendentals=0, bytes_accessed=bytes_accessed
        ),
    )(x_p, wh_p, bh_p, whd_p, bhd_p)

    mean = fused[:B, :Z]
    std = fused[:B, Z:2 * Z]
    return mean, std


def _init_linear(key, fan_in, fan_out):
    """Deterministic init matching nn.Linear's U(-1/sqrt(fan_in), 1/sqrt(fan_in))."""
    kw, kb = jax.random.split(key)
    bound = 1.0 / jnp.sqrt(jnp.float32(fan_in))
    w = jax.random.uniform(kw, (fan_in, fan_out), jnp.float32, -bound, bound)
    b = jax.random.uniform(kb, (fan_out,), jnp.float32, -bound, bound)
    return w, b


def reference_forward(x, w_h, b_h, w_m, b_m, w_s, b_s):
    h = jnp.maximum(x @ w_h + b_h, 0.0)
    mean = h @ w_m + b_m
    std = jnp.maximum(h @ w_s + b_s, 0.0)
    return mean, std


if __name__ == "__main__":
    # Small shapes consistent with Encoder(hidden_dim=500, z_dim=20, input_dim=784)
    batch, input_dim, hidden_dim, z_dim = 16, 784, 500, 20

    key = jax.random.PRNGKey(0)
    kx, kh, km, ks = jax.random.split(key, 4)

    x = jax.random.normal(kx, (batch, input_dim), jnp.float32)
    w_h, b_h = _init_linear(kh, input_dim, hidden_dim)
    w_m, b_m = _init_linear(km, hidden_dim, z_dim)
    w_s, b_s = _init_linear(ks, hidden_dim, z_dim)

    mean, std = encoder_forward(x, w_h, b_h, w_m, b_m, w_s, b_s)
    jax.block_until_ready((mean, std))

    mean_ref, std_ref = reference_forward(x, w_h, b_h, w_m, b_m, w_s, b_s)
    assert mean.shape == (batch, z_dim) and std.shape == (batch, z_dim)
    assert jnp.allclose(mean, mean_ref, atol=1e-4, rtol=1e-4)
    assert jnp.allclose(std, std_ref, atol=1e-4, rtol=1e-4)
    assert jnp.all(std >= 0.0)

    print("KERNEL_OK")
</pallas_src>

<mosaic_0001>
module attributes {stable_mosaic.version = 11 : i64} {
  func.func @encoder_kernel(%arg0: i32, %arg1: memref<16x896xf32, #tpu.memory_space<vmem>>, %arg2: memref<896x512xf32, #tpu.memory_space<vmem>>, %arg3: memref<1x512xf32, #tpu.memory_space<vmem>>, %arg4: memref<512x128xf32, #tpu.memory_space<vmem>>, %arg5: memref<1x128xf32, #tpu.memory_space<vmem>>, %arg6: memref<16x128xf32, #tpu.memory_space<vmem>>) attributes {dimension_semantics = [#tpu.dimension_semantics<parallel>], iteration_bounds = array<i64: 1>, scalar_prefetch = 0 : i64, scratch_operands = 0 : i64, tpu.core_type = #tpu.core_type<tc>, window_params = [{transform_indices = @transform_0, window_bounds = array<i64: 16, 896>}, {pipeline_mode = #tpu.pipeline_mode<synchronous>, transform_indices = @transform_1, window_bounds = array<i64: 896, 512>}, {pipeline_mode = #tpu.pipeline_mode<synchronous>, transform_indices = @transform_2, window_bounds = array<i64: 1, 512>}, {pipeline_mode = #tpu.pipeline_mode<synchronous>, transform_indices = @transform_3, window_bounds = array<i64: 512, 128>}, {pipeline_mode = #tpu.pipeline_mode<synchronous>, transform_indices = @transform_4, window_bounds = array<i64: 1, 128>}, {transform_indices = @transform_5, window_bounds = array<i64: 16, 128>}]} {
    %c0 = arith.constant 0 : index
    %c0_0 = arith.constant 0 : index
    %0 = vector.load %arg1[%c0, %c0_0] : memref<16x896xf32, #tpu.memory_space<vmem>>, vector<16x896xf32>
    %c0_1 = arith.constant 0 : index
    %c0_2 = arith.constant 0 : index
    %1 = vector.load %arg2[%c0_1, %c0_2] : memref<896x512xf32, #tpu.memory_space<vmem>>, vector<896x512xf32>
    %cst = arith.constant dense<0.000000e+00> : vector<16x512xf32>
    %2 = tpu.matmul %0, %1, %cst {dimension_numbers = #tpu.dot_dimension_numbers<[1], [0], [0], [1], [0, 0, 1, 1], [], []>} : vector<16x896xf32>, vector<896x512xf32>, vector<16x512xf32> -> vector<16x512xf32>
    %c0_3 = arith.constant 0 : index
    %c0_4 = arith.constant 0 : index
    %3 = vector.load %arg3[%c0_3, %c0_4] : memref<1x512xf32, #tpu.memory_space<vmem>>, vector<1x512xf32>
    %4 = vector.broadcast %3 : vector<1x512xf32> to vector<16x512xf32>
    %5 = arith.addf %2, %4 : vector<16x512xf32>
    %cst_5 = arith.constant 0.000000e+00 : f32
    %6 = vector.broadcast %cst_5 : f32 to vector<16x512xf32>
    %7 = arith.maximumf %5, %6 : vector<16x512xf32>
    %c0_6 = arith.constant 0 : index
    %c0_7 = arith.constant 0 : index
    %8 = vector.load %arg4[%c0_6, %c0_7] : memref<512x128xf32, #tpu.memory_space<vmem>>, vector<512x128xf32>
    %cst_8 = arith.constant dense<0.000000e+00> : vector<16x128xf32>
    %9 = tpu.matmul %7, %8, %cst_8 {dimension_numbers = #tpu.dot_dimension_numbers<[1], [0], [0], [1], [0, 0, 1, 1], [], []>} : vector<16x512xf32>, vector<512x128xf32>, vector<16x128xf32> -> vector<16x128xf32>
    %c0_9 = arith.constant 0 : index
    %c0_10 = arith.constant 0 : index
    %10 = vector.load %arg5[%c0_9, %c0_10] : memref<1x128xf32, #tpu.memory_space<vmem>>, vector<1x128xf32>
    %11 = vector.broadcast %10 : vector<1x128xf32> to vector<16x128xf32>
    %12 = arith.addf %9, %11 : vector<16x128xf32>
    %13 = tpu.iota {dimensions = array<i32: 1>} : vector<16x128xi32>
    %c20_i32 = arith.constant 20 : i32
    %14 = vector.broadcast %c20_i32 : i32 to vector<16x128xi32>
    %15 = arith.cmpi sge, %13, %14 : vector<16x128xi32>
    %cst_11 = arith.constant 0.000000e+00 : f32
    %16 = vector.broadcast %cst_11 : f32 to vector<16x128xf32>
    %17 = arith.maximumf %12, %16 : vector<16x128xf32>
    %18 = arith.select %15, %17, %12 : vector<16x128xi1>, vector<16x128xf32>
    %c0_12 = arith.constant 0 : index
    %c0_13 = arith.constant 0 : index
    %19 = vector.load %arg6[%c0_12, %c0_13] : memref<16x128xf32, #tpu.memory_space<vmem>>, vector<16x128xf32>
    tpu.vector_store %arg6[%c0_12, %c0_13], %18 {strides = array<i32>} : memref<16x128xf32, #tpu.memory_space<vmem>>, vector<16x128xf32>,
    return
  }
  func.func @transform_0(%arg0: i32) -> (i32, i32) {
    %c0_i32 = arith.constant 0 : i32
    %c0_i32_0 = arith.constant 0 : i32
    return %arg0, %c0_i32 : i32, i32
  }
  func.func @transform_1(%arg0: i32) -> (i32, i32) {
    %c0_i32 = arith.constant 0 : i32
    %c0_i32_0 = arith.constant 0 : i32
    %c0_i32_1 = arith.constant 0 : i32
    return %c0_i32, %c0_i32_0 : i32, i32
  }
  func.func @transform_2(%arg0: i32) -> (i32, i32) {
    %c0_i32 = arith.constant 0 : i32
    %c0_i32_0 = arith.constant 0 : i32
    %c0_i32_1 = arith.constant 0 : i32
    return %c0_i32, %c0_i32_0 : i32, i32
  }
  func.func @transform_3(%arg0: i32) -> (i32, i32) {
    %c0_i32 = arith.constant 0 : i32
    %c0_i32_0 = arith.constant 0 : i32
    %c0_i32_1 = arith.constant 0 : i32
    return %c0_i32, %c0_i32_0 : i32, i32
  }
  func.func @transform_4(%arg0: i32) -> (i32, i32) {
    %c0_i32 = arith.constant 0 : i32
    %c0_i32_0 = arith.constant 0 : i32
    %c0_i32_1 = arith.constant 0 : i32
    return %c0_i32, %c0_i32_0 : i32, i32
  }
  func.func @transform_5(%arg0: i32) -> (i32, i32) {
    %c0_i32 = arith.constant 0 : i32
    %c0_i32_0 = arith.constant 0 : i32
    return %arg0, %c0_i32 : i32, i32
  }
}

</mosaic_0001>

<llo_original>
// kernel: encoder_forward.1
$region0: #{encoder_forward.1}
  #allocation0 [shape = 'u32[]', space=smem, size = 0x4, offset = 0x4, fixed_abs, tag = 'smem constant byte address 0x4 - core index']
  #allocation1 [shape = 'u32[144,128]{1,0:T(1,128)}', space=vmem, size = 0x12000, scoped, tag = 'internal scratch']
  %s0 = inlined_call_operand.vmem [shape: f32[16,896], index: 0, kind: input, shape index: {}]
  %s1 = inlined_call_operand.vmem [shape: f32[896,512], index: 1, kind: input, shape index: {}]
  %s2 = inlined_call_operand.vmem [shape: f32[1,512], index: 2, kind: input, shape index: {}]
  %s3 = inlined_call_operand.vmem [shape: f32[512,128], index: 3, kind: input, shape index: {}]
  %s4 = inlined_call_operand.vmem [shape: f32[1,128], index: 4, kind: input, shape index: {}]
  %s5 = inlined_call_operand.vmem [shape: f32[16,128], index: 5, kind: output, shape index: {}]
  %s6 = sld [smem:[#allocation0]]
  $region30: #{encoder_forward.1} parent=0
    _
  %s8 = ssub.s32 1, %s6
  %s9 = scalar_select 0, %s8, %s6
  // Predicated region
  $region2: #{encoder_forward.1} parent=0 // pred_check
    _
  $region3: #{encoder_forward.1} parent=0 // pred_check_branch
    %11 = sbr.rel (0) target = $region5
  $region4: #{encoder_forward.1} parent=0 // pred_region
    _
  $region5: #{encoder_forward.1} parent=0 // pred_fallthru
    _
  // Predicated region
  $region6: #{encoder_forward.1} parent=0 // pred_check
    _
  $region7: #{encoder_forward.1} parent=0 // pred_check_branch
    %13 = sbr.rel (0) target = $region9
  $region8: #{encoder_forward.1} parent=0 // pred_region
    _
  $region9: #{encoder_forward.1} parent=0 // pred_fallthru
    _
  // Predicated region
  $region10: #{encoder_forward.1} parent=0 // pred_check
    _
  $region11: #{encoder_forward.1} parent=0 // pred_check_branch
    %15 = sbr.rel (0) target = $region13
  $region12: #{encoder_forward.1} parent=0 // pred_region
    _
  $region13: #{encoder_forward.1} parent=0 // pred_fallthru
    _
  // Predicated region
  $region14: #{encoder_forward.1} parent=0 // pred_check
    _
  $region15: #{encoder_forward.1} parent=0 // pred_check_branch
    %17 = sbr.rel (0) target = $region17
  $region16: #{encoder_forward.1} parent=0 // pred_region
    _
  $region17: #{encoder_forward.1} parent=0 // pred_fallthru
    _
  // Predicated region
  $region18: #{encoder_forward.1} parent=0 // pred_check
    _
  $region19: #{encoder_forward.1} parent=0 // pred_check_branch
    %19 = sbr.rel (0) target = $region21
  $region20: #{encoder_forward.1} parent=0 // pred_region
    _
  $region21: #{encoder_forward.1} parent=0 // pred_fallthru
    _
  %v20 = vld [vmem:[%s0] sm:$0xff]
  %v21 = vld [vmem:[%s0 + $0x8] sm:$0xff]
  %v22 = vld [vmem:[%s0 + $0x10] sm:$0xff]
  %v23 = vld [vmem:[%s0 + $0x18] sm:$0xff]
  %v24 = vld [vmem:[%s0 + $0x20] sm:$0xff]
  %v25 = vld [vmem:[%s0 + $0x28] sm:$0xff]
  %v26 = vld [vmem:[%s0 + $0x30] sm:$0xff]
  %v27 = vld [vmem:[%s0 + $0x38] sm:$0xff]
  %v28 = vld [vmem:[%s0 + $0x40] sm:$0xff]
  %v29 = vld [vmem:[%s0 + $0x48] sm:$0xff]
  %v30 = vld [vmem:[%s0 + $0x50] sm:$0xff]
  %v31 = vld [vmem:[%s0 + $0x58] sm:$0xff]
  %v32 = vld [vmem:[%s0 + $0x60] sm:$0xff]
  %v33 = vld [vmem:[%s0 + $0x68] sm:$0xff]
  %v34 = vld [vmem:[%s1] sm:$0xff]
  %v35 = vld [vmem:[%s1 + $0x8] sm:$0xff]
  %v36 = vld [vmem:[%s1 + $0x10] sm:$0xff]
  %v37 = vld [vmem:[%s1 + $0x18] sm:$0xff]
  %v38 = vld [vmem:[%s1 + $0x20] sm:$0xff]
  %v39 = vld [vmem:[%s1 + $0x28] sm:$0xff]
  %v40 = vld [vmem:[%s1 + $0x30] sm:$0xff]
  %v41 = vld [vmem:[%s1 + $0x38] sm:$0xff]
  %v42 = vld [vmem:[%s1 + $0x40] sm:$0xff]
  %v43 = vld [vmem:[%s1 + $0x48] sm:$0xff]
  %v44 = vld [vmem:[%s1 + $0x50] sm:$0xff]
  %v45 = vld [vmem:[%s1 + $0x58] sm:$0xff]
  %v46 = vld [vmem:[%s1 + $0x60] sm:$0xff]
  %v47 = vld [vmem:[%s1 + $0x68] sm:$0xff]
  %v48 = vld [vmem:[%s1 + $0x70] sm:$0xff]
  %v49 = vld [vmem:[%s1 + $0x78] sm:$0xff]
  %v50 = vld [vmem:[%s1 + $0x80] sm:$0xff]
  %v51 = vld [vmem:[%s1 + $0x88] sm:$0xff]
  %v52 = vld [vmem:[%s1 + $0x90] sm:$0xff]
  %v53 = vld [vmem:[%s1 + $0x98] sm:$0xff]
  %v54 = vld [vmem:[%s1 + $0xa0] sm:$0xff]
  %v55 = vld [vmem:[%s1 + $0xa8] sm:$0xff]
  %v56 = vld [vmem:[%s1 + $0xb0] sm:$0xff]
  %v57 = vld [vmem:[%s1 + $0xb8] sm:$0xff]
  %v58 = vld [vmem:[%s1 + $0xc0] sm:$0xff]
  %v59 = vld [vmem:[%s1 + $0xc8] sm:$0xff]
  %v60 = vld [vmem:[%s1 + $0xd0] sm:$0xff]
  %v61 = vld [vmem:[%s1 + $0xd8] sm:$0xff]
  %v62 = vld [vmem:[%s1 + $0xe0] sm:$0xff]
  %v63 = vld [vmem:[%s1 + $0xe8] sm:$0xff]
  %v64 = vld [vmem:[%s1 + $0xf0] sm:$0xff]
  %v65 = vld [vmem:[%s1 + $0xf8] sm:$0xff]
  %v66 = vld [vmem:[%s1 + $0x100] sm:$0xff]
  %v67 = vld [vmem:[%s1 + $0x108] sm:$0xff]
  %v68 = vld [vmem:[%s1 + $0x110] sm:$0xff]
  %v69 = vld [vmem:[%s1 + $0x118] sm:$0xff]
  %v70 = vld [vmem:[%s1 + $0x120] sm:$0xff]
  %v71 = vld [vmem:[%s1 + $0x128] sm:$0xff]
  %v72 = vld [vmem:[%s1 + $0x130] sm:$0xff]
  %v73 = vld [vmem:[%s1 + $0x138] sm:$0xff]
  %v74 = vld [vmem:[%s1 + $0x140] sm:$0xff]
  %v75 = vld [vmem:[%s1 + $0x148] sm:$0xff]
  %v76 = vld [vmem:[%s1 + $0x150] sm:$0xff]
  %v77 = vld [vmem:[%s1 + $0x158] sm:$0xff]
  %v78 = vld [vmem:[%s1 + $0x160] sm:$0xff]
  %v79 = vld [vmem:[%s1 + $0x168] sm:$0xff]
  %v80 = vld [vmem:[%s1 + $0x170] sm:$0xff]
  %v81 = vld [vmem:[%s1 + $0x178] sm:$0xff]
  %v82 = vld [vmem:[%s1 + $0x180] sm:$0xff]
  %v83 = vld [vmem:[%s1 + $0x188] sm:$0xff]
  %v84 = vld [vmem:[%s1 + $0x190] sm:$0xff]
  %v85 = vld [vmem:[%s1 + $0x198] sm:$0xff]
  %v86 = vld [vmem:[%s1 + $0x1a0] sm:$0xff]
  %v87 = vld [vmem:[%s1 + $0x1a8] sm:$0xff]
  %v88 = vld [vmem:[%s1 + $0x1b0] sm:$0xff]
  %v89 = vld [vmem:[%s1 + $0x1b8] sm:$0xff]
  %v90 = vld [vmem:[%s1 + $0x1c0] sm:$0xff]
  %v91 = vld [vmem:[%s1 + $0x1c8] sm:$0xff]
  %v92 = vld [vmem:[%s1 + $0x1d0] sm:$0xff]
  %v93 = vld [vmem:[%s1 + $0x1d8] sm:$0xff]
  %v94 = vld [vmem:[%s1 + $0x1e0] sm:$0xff]
  %v95 = vld [vmem:[%s1 + $0x1e8] sm:$0xff]
  %v96 = vld [vmem:[%s1 + $0x1f0] sm:$0xff]
  %v97 = vld [vmem:[%s1 + $0x1f8] sm:$0xff]
  %v98 = vld [vmem:[%s1 + $0x200] sm:$0xff]
  %v99 = vld [vmem:[%s1 + $0x208] sm:$0xff]
  %v100 = vld [vmem:[%s1 + $0x210] sm:$0xff]
  %v101 = vld [vmem:[%s1 + $0x218] sm:$0xff]
  %v102 = vld [vmem:[%s1 + $0x220] sm:$0xff]
  %v103 = vld [vmem:[%s1 + $0x228] sm:$0xff]
  %v104 = vld [vmem:[%s1 + $0x230] sm:$0xff]
  %v105 = vld [vmem:[%s1 + $0x238] sm:$0xff]
  %v106 = vld [vmem:[%s1 + $0x240] sm:$0xff]
  %v107 = vld [vmem:[%s1 + $0x248] sm:$0xff]
  %v108 = vld [vmem:[%s1 + $0x250] sm:$0xff]
  %v109 = vld [vmem:[%s1 + $0x258] sm:$0xff]
  %v110 = vld [vmem:[%s1 + $0x260] sm:$0xff]
  %v111 = vld [vmem:[%s1 + $0x268] sm:$0xff]
  %v112 = vld [vmem:[%s1 + $0x270] sm:$0xff]
  %v113 = vld [vmem:[%s1 + $0x278] sm:$0xff]
  %v114 = vld [vmem:[%s1 + $0x280] sm:$0xff]
  %v115 = vld [vmem:[%s1 + $0x288] sm:$0xff]
  %v116 = vld [vmem:[%s1 + $0x290] sm:$0xff]
  %v117 = vld [vmem:[%s1 + $0x298] sm:$0xff]
  %v118 = vld [vmem:[%s1 + $0x2a0] sm:$0xff]
  %v119 = vld [vmem:[%s1 + $0x2a8] sm:$0xff]
  %v120 = vld [vmem:[%s1 + $0x2b0] sm:$0xff]
  %v121 = vld [vmem:[%s1 + $0x2b8] sm:$0xff]
  %v122 = vld [vmem:[%s1 + $0x2c0] sm:$0xff]
  %v123 = vld [vmem:[%s1 + $0x2c8] sm:$0xff]
  %v124 = vld [vmem:[%s1 + $0x2d0] sm:$0xff]
  %v125 = vld [vmem:[%s1 + $0x2d8] sm:$0xff]
  %v126 = vld [vmem:[%s1 + $0x2e0] sm:$0xff]
  %v127 = vld [vmem:[%s1 + $0x2e8] sm:$0xff]
  %v128 = vld [vmem:[%s1 + $0x2f0] sm:$0xff]
  %v129 = vld [vmem:[%s1 + $0x2f8] sm:$0xff]
  %v130 = vld [vmem:[%s1 + $0x300] sm:$0xff]
  %v131 = vld [vmem:[%s1 + $0x308] sm:$0xff]
  %v132 = vld [vmem:[%s1 + $0x310] sm:$0xff]
  %v133 = vld [vmem:[%s1 + $0x318] sm:$0xff]
  %v134 = vld [vmem:[%s1 + $0x320] sm:$0xff]
  %v135 = vld [vmem:[%s1 + $0x328] sm:$0xff]
  %v136 = vld [vmem:[%s1 + $0x330] sm:$0xff]
  %v137 = vld [vmem:[%s1 + $0x338] sm:$0xff]
  %v138 = vld [vmem:[%s1 + $0x340] sm:$0xff]
  %v139 = vld [vmem:[%s1 + $0x348] sm:$0xff]
  %v140 = vld [vmem:[%s1 + $0x350] sm:$0xff]
  %v141 = vld [vmem:[%s1 + $0x358] sm:$0xff]
  %v142 = vld [vmem:[%s1 + $0x360] sm:$0xff]
  %v143 = vld [vmem:[%s1 + $0x368] sm:$0xff]
  %v144 = vld [vmem:[%s1 + $0x370] sm:$0xff]
  %v145 = vld [vmem:[%s1 + $0x378] sm:$0xff]
  %v146 = vld [vmem:[%s1 + $0x380] sm:$0xff]
  %v147 = vld [vmem:[%s1 + $0x388] sm:$0xff]
  %v148 = vld [vmem:[%s1 + $0x390] sm:$0xff]
  %v149 = vld [vmem:[%s1 + $0x398] sm:$0xff]
  %v150 = vld [vmem:[%s1 + $0x3a0] sm:$0xff]
  %v151 = vld [vmem:[%s1 + $0x3a8] sm:$0xff]
  %v152 = vld [vmem:[%s1 + $0x3b0] sm:$0xff]
  %v153 = vld [vmem:[%s1 + $0x3b8] sm:$0xff]
  %v154 = vld [vmem:[%s1 + $0x3c0] sm:$0xff]
  %v155 = vld [vmem:[%s1 + $0x3c8] sm:$0xff]
  %v156 = vld [vmem:[%s1 + $0x3d0] sm:$0xff]
  %v157 = vld [vmem:[%s1 + $0x3d8] sm:$0xff]
  %v158 = vld [vmem:[%s1 + $0x3e0] sm:$0xff]
  %v159 = vld [vmem:[%s1 + $0x3e8] sm:$0xff]
  %v160 = vld [vmem:[%s1 + $0x3f0] sm:$0xff]
  %v161 = vld [vmem:[%s1 + $0x3f8] sm:$0xff]
  %v162 = vld [vmem:[%s1 + $0x400] sm:$0xff]
  %v163 = vld [vmem:[%s1 + $0x408] sm:$0xff]
  %v164 = vld [vmem:[%s1 + $0x410] sm:$0xff]
  %v165 = vld [vmem:[%s1 + $0x418] sm:$0xff]
  %v166 = vld [vmem:[%s1 + $0x420] sm:$0xff]
  %v167 = vld [vmem:[%s1 + $0x428] sm:$0xff]
  %v168 = vld [vmem:[%s1 + $0x430] sm:$0xff]
  %v169 = vld [vmem:[%s1 + $0x438] sm:$0xff]
  %v170 = vld [vmem:[%s1 + $0x440] sm:$0xff]
  %v171 = vld [vmem:[%s1 + $0x448] sm:$0xff]
  %v172 = vld [vmem:[%s1 + $0x450] sm:$0xff]
  %v173 = vld [vmem:[%s1 + $0x458] sm:$0xff]
  %v174 = vld [vmem:[%s1 + $0x460] sm:$0xff]
  %v175 = vld [vmem:[%s1 + $0x468] sm:$0xff]
  %v176 = vld [vmem:[%s1 + $0x470] sm:$0xff]
  %v177 = vld [vmem:[%s1 + $0x478] sm:$0xff]
  %v178 = vld [vmem:[%s1 + $0x480] sm:$0xff]
  %v179 = vld [vmem:[%s1 + $0x488] sm:$0xff]
  %v180 = vld [vmem:[%s1 + $0x490] sm:$0xff]
  %v181 = vld [vmem:[%s1 + $0x498] sm:$0xff]
  %v182 = vld [vmem:[%s1 + $0x4a0] sm:$0xff]
  %v183 = vld [vmem:[%s1 + $0x4a8] sm:$0xff]
  %v184 = vld [vmem:[%s1 + $0x4b0] sm:$0xff]
  %v185 = vld [vmem:[%s1 + $0x4b8] sm:$0xff]
  %v186 = vld [vmem:[%s1 + $0x4c0] sm:$0xff]
  %v187 = vld [vmem:[%s1 + $0x4c8] sm:$0xff]
  %v188 = vld [vmem:[%s1 + $0x4d0] sm:$0xff]
  %v189 = vld [vmem:[%s1 + $0x4d8] sm:$0xff]
  %v190 = vld [vmem:[%s1 + $0x4e0] sm:$0xff]
  %v191 = vld [vmem:[%s1 + $0x4e8] sm:$0xff]
  %v192 = vld [vmem:[%s1 + $0x4f0] sm:$0xff]
  %v193 = vld [vmem:[%s1 + $0x4f8] sm:$0xff]
  %v194 = vld [vmem:[%s1 + $0x500] sm:$0xff]
  %v195 = vld [vmem:[%s1 + $0x508] sm:$0xff]
  %v196 = vld [vmem:[%s1 + $0x510] sm:$0xff]
  %v197 = vld [vmem:[%s1 + $0x518] sm:$0xff]
  %v198 = vld [vmem:[%s1 + $0x520] sm:$0xff]
  %v199 = vld [vmem:[%s1 + $0x528] sm:$0xff]
  %v200 = vld [vmem:[%s1 + $0x530] sm:$0xff]
  %v201 = vld [vmem:[%s1 + $0x538] sm:$0xff]
  %v202 = vld [vmem:[%s1 + $0x540] sm:$0xff]
  %v203 = vld [vmem:[%s1 + $0x548] sm:$0xff]
  %v204 = vld [vmem:[%s1 + $0x550] sm:$0xff]
  %v205 = vld [vmem:[%s1 + $0x558] sm:$0xff]
  %v206 = vld [vmem:[%s1 + $0x560] sm:$0xff]
  %v207 = vld [vmem:[%s1 + $0x568] sm:$0xff]
  %v208 = vld [vmem:[%s1 + $0x570] sm:$0xff]
  %v209 = vld [vmem:[%s1 + $0x578] sm:$0xff]
  %v210 = vld [vmem:[%s1 + $0x580] sm:$0xff]
  %v211 = vld [vmem:[%s1 + $0x588] sm:$0xff]
  %v212 = vld [vmem:[%s1 + $0x590] sm:$0xff]
  %v213 = vld [vmem:[%s1 + $0x598] sm:$0xff]
  %v214 = vld [vmem:[%s1 + $0x5a0] sm:$0xff]
  %v215 = vld [vmem:[%s1 + $0x5a8] sm:$0xff]
  %v216 = vld [vmem:[%s1 + $0x5b0] sm:$0xff]
  %v217 = vld [vmem:[%s1 + $0x5b8] sm:$0xff]
  %v218 = vld [vmem:[%s1 + $0x5c0] sm:$0xff]
  %v219 = vld [vmem:[%s1 + $0x5c8] sm:$0xff]
  %v220 = vld [vmem:[%s1 + $0x5d0] sm:$0xff]
  %v221 = vld [vmem:[%s1 + $0x5d8] sm:$0xff]
  %v222 = vld [vmem:[%s1 + $0x5e0] sm:$0xff]
  %v223 = vld [vmem:[%s1 + $0x5e8] sm:$0xff]
  %v224 = vld [vmem:[%s1 + $0x5f0] sm:$0xff]
  %v225 = vld [vmem:[%s1 + $0x5f8] sm:$0xff]
  %v226 = vld [vmem:[%s1 + $0x600] sm:$0xff]
  %v227 = vld [vmem:[%s1 + $0x608] sm:$0xff]
  %v228 = vld [vmem:[%s1 + $0x610] sm:$0xff]
  %v229 = vld [vmem:[%s1 + $0x618] sm:$0xff]
  %v230 = vld [vmem:[%s1 + $0x620] sm:$0xff]
  %v231 = vld [vmem:[%s1 + $0x628] sm:$0xff]
  %v232 = vld [vmem:[%s1 + $0x630] sm:$0xff]
  %v233 = vld [vmem:[%s1 + $0x638] sm:$0xff]
  %v234 = vld [vmem:[%s1 + $0x640] sm:$0xff]
  %v235 = vld [vmem:[%s1 + $0x648] sm:$0xff]
  %v236 = vld [vmem:[%s1 + $0x650] sm:$0xff]
  %v237 = vld [vmem:[%s1 + $0x658] sm:$0xff]
  %v238 = vld [vmem:[%s1 + $0x660] sm:$0xff]
  %v239 = vld [vmem:[%s1 + $0x668] sm:$0xff]
  %v240 = vld [vmem:[%s1 + $0x670] sm:$0xff]
  %v241 = vld [vmem:[%s1 + $0x678] sm:$0xff]
  %v242 = vld [vmem:[%s1 + $0x680] sm:$0xff]
  %v243 = vld [vmem:[%s1 + $0x688] sm:$0xff]
  %v244 = vld [vmem:[%s1 + $0x690] sm:$0xff]
  %v245 = vld [vmem:[%s1 + $0x698] sm:$0xff]
  %v246 = vld [vmem:[%s1 + $0x6a0] sm:$0xff]
  %v247 = vld [vmem:[%s1 + $0x6a8] sm:$0xff]
  %v248 = vld [vmem:[%s1 + $0x6b0] sm:$0xff]
  %v249 = vld [vmem:[%s1 + $0x6b8] sm:$0xff]
  %v250 = vld [vmem:[%s1 + $0x6c0] sm:$0xff]
  %v251 = vld [vmem:[%s1 + $0x6c8] sm:$0xff]
  %v252 = vld [vmem:[%s1 + $0x6d0] sm:$0xff]
  %v253 = vld [vmem:[%s1 + $0x6d8] sm:$0xff]
  %v254 = vld [vmem:[%s1 + $0x6e0] sm:$0xff]
  %v255 = vld [vmem:[%s1 + $0x6e8] sm:$0xff]
  %v256 = vld [vmem:[%s1 + $0x6f0] sm:$0xff]
  %v257 = vld [vmem:[%s1 + $0x6f8] sm:$0xff]
  %v258 = vld [vmem:[%s1 + $0x700] sm:$0xff]
  %v259 = vld [vmem:[%s1 + $0x708] sm:$0xff]
  %v260 = vld [vmem:[%s1 + $0x710] sm:$0xff]
  %v261 = vld [vmem:[%s1 + $0x718] sm:$0xff]
  %v262 = vld [vmem:[%s1 + $0x720] sm:$0xff]
  %v263 = vld [vmem:[%s1 + $0x728] sm:$0xff]
  %v264 = vld [vmem:[%s1 + $0x730] sm:$0xff]
  %v265 = vld [vmem:[%s1 + $0x738] sm:$0xff]
  %v266 = vld [vmem:[%s1 + $0x740] sm:$0xff]
  %v267 = vld [vmem:[%s1 + $0x748] sm:$0xff]
  %v268 = vld [vmem:[%s1 + $0x750] sm:$0xff]
  %v269 = vld [vmem:[%s1 + $0x758] sm:$0xff]
  %v270 = vld [vmem:[%s1 + $0x760] sm:$0xff]
  %v271 = vld [vmem:[%s1 + $0x768] sm:$0xff]
  %v272 = vld [vmem:[%s1 + $0x770] sm:$0xff]
  %v273 = vld [vmem:[%s1 + $0x778] sm:$0xff]
  %v274 = vld [vmem:[%s1 + $0x780] sm:$0xff]
  %v275 = vld [vmem:[%s1 + $0x788] sm:$0xff]
  %v276 = vld [vmem:[%s1 + $0x790] sm:$0xff]
  %v277 = vld [vmem:[%s1 + $0x798] sm:$0xff]
  %v278 = vld [vmem:[%s1 + $0x7a0] sm:$0xff]
  %v279 = vld [vmem:[%s1 + $0x7a8] sm:$0xff]
  %v280 = vld [vmem:[%s1 + $0x7b0] sm:$0xff]
  %v281 = vld [vmem:[%s1 + $0x7b8] sm:$0xff]
  %v282 = vld [vmem:[%s1 + $0x7c0] sm:$0xff]
  %v283 = vld [vmem:[%s1 + $0x7c8] sm:$0xff]
  %v284 = vld [vmem:[%s1 + $0x7d0] sm:$0xff]
  %v285 = vld [vmem:[%s1 + $0x7d8] sm:$0xff]
  %v286 = vld [vmem:[%s1 + $0x7e0] sm:$0xff]
  %v287 = vld [vmem:[%s1 + $0x7e8] sm:$0xff]
  %v288 = vld [vmem:[%s1 + $0x7f0] sm:$0xff]
  %v289 = vld [vmem:[%s1 + $0x7f8] sm:$0xff]
  %v290 = vld [vmem:[%s1 + $0x800] sm:$0xff]
  %v291 = vld [vmem:[%s1 + $0x808] sm:$0xff]
  %v292 = vld [vmem:[%s1 + $0x810] sm:$0xff]
  %v293 = vld [vmem:[%s1 + $0x818] sm:$0xff]
  %v294 = vld [vmem:[%s1 + $0x820] sm:$0xff]
  %v295 = vld [vmem:[%s1 + $0x828] sm:$0xff]
  %v296 = vld [vmem:[%s1 + $0x830] sm:$0xff]
  %v297 = vld [vmem:[%s1 + $0x838] sm:$0xff]
  %v298 = vld [vmem:[%s1 + $0x840] sm:$0xff]
  %v299 = vld [vmem:[%s1 + $0x848] sm:$0xff]
  %v300 = vld [vmem:[%s1 + $0x850] sm:$0xff]
  %v301 = vld [vmem:[%s1 + $0x858] sm:$0xff]
  %v302 = vld [vmem:[%s1 + $0x860] sm:$0xff]
  %v303 = vld [vmem:[%s1 + $0x868] sm:$0xff]
  %v304 = vld [vmem:[%s1 + $0x870] sm:$0xff]
  %v305 = vld [vmem:[%s1 + $0x878] sm:$0xff]
  %v306 = vld [vmem:[%s1 + $0x880] sm:$0xff]
  %v307 = vld [vmem:[%s1 + $0x888] sm:$0xff]
  %v308 = vld [vmem:[%s1 + $0x890] sm:$0xff]
  %v309 = vld [vmem:[%s1 + $0x898] sm:$0xff]
  %v310 = vld [vmem:[%s1 + $0x8a0] sm:$0xff]
  %v311 = vld [vmem:[%s1 + $0x8a8] sm:$0xff]
  %v312 = vld [vmem:[%s1 + $0x8b0] sm:$0xff]
  %v313 = vld [vmem:[%s1 + $0x8b8] sm:$0xff]
  %v314 = vld [vmem:[%s1 + $0x8c0] sm:$0xff]
  %v315 = vld [vmem:[%s1 + $0x8c8] sm:$0xff]
  %v316 = vld [vmem:[%s1 + $0x8d0] sm:$0xff]
  %v317 = vld [vmem:[%s1 + $0x8d8] sm:$0xff]
  %v318 = vld [vmem:[%s1 + $0x8e0] sm:$0xff]
  %v319 = vld [vmem:[%s1 + $0x8e8] sm:$0xff]
  %v320 = vld [vmem:[%s1 + $0x8f0] sm:$0xff]
  %v321 = vld [vmem:[%s1 + $0x8f8] sm:$0xff]
  %v322 = vld [vmem:[%s1 + $0x900] sm:$0xff]
  %v323 = vld [vmem:[%s1 + $0x908] sm:$0xff]
  %v324 = vld [vmem:[%s1 + $0x910] sm:$0xff]
  %v325 = vld [vmem:[%s1 + $0x918] sm:$0xff]
  %v326 = vld [vmem:[%s1 + $0x920] sm:$0xff]
  %v327 = vld [vmem:[%s1 + $0x928] sm:$0xff]
  %v328 = vld [vmem:[%s1 + $0x930] sm:$0xff]
  %v329 = vld [vmem:[%s1 + $0x938] sm:$0xff]
  %v330 = vld [vmem:[%s1 + $0x940] sm:$0xff]
  %v331 = vld [vmem:[%s1 + $0x948] sm:$0xff]
  %v332 = vld [vmem:[%s1 + $0x950] sm:$0xff]
  %v333 = vld [vmem:[%s1 + $0x958] sm:$0xff]
  %v334 = vld [vmem:[%s1 + $0x960] sm:$0xff]
  %v335 = vld [vmem:[%s1 + $0x968] sm:$0xff]
  %v336 = vld [vmem:[%s1 + $0x970] sm:$0xff]
  %v337 = vld [vmem:[%s1 + $0x978] sm:$0xff]
  %v338 = vld [vmem:[%s1 + $0x980] sm:$0xff]
  %v339 = vld [vmem:[%s1 + $0x988] sm:$0xff]
  %v340 = vld [vmem:[%s1 + $0x990] sm:$0xff]
  %v341 = vld [vmem:[%s1 + $0x998] sm:$0xff]
  %v342 = vld [vmem:[%s1 + $0x9a0] sm:$0xff]
  %v343 = vld [vmem:[%s1 + $0x9a8] sm:$0xff]
  %v344 = vld [vmem:[%s1 + $0x9b0] sm:$0xff]
  %v345 = vld [vmem:[%s1 + $0x9b8] sm:$0xff]
  %v346 = vld [vmem:[%s1 + $0x9c0] sm:$0xff]
  %v347 = vld [vmem:[%s1 + $0x9c8] sm:$0xff]
  %v348 = vld [vmem:[%s1 + $0x9d0] sm:$0xff]
  %v349 = vld [vmem:[%s1 + $0x9d8] sm:$0xff]
  %v350 = vld [vmem:[%s1 + $0x9e0] sm:$0xff]
  %v351 = vld [vmem:[%s1 + $0x9e8] sm:$0xff]
  %v352 = vld [vmem:[%s1 + $0x9f0] sm:$0xff]
  %v353 = vld [vmem:[%s1 + $0x9f8] sm:$0xff]
  %v354 = vld [vmem:[%s1 + $0xa00] sm:$0xff]
  %v355 = vld [vmem:[%s1 + $0xa08] sm:$0xff]
  %v356 = vld [vmem:[%s1 + $0xa10] sm:$0xff]
  %v357 = vld [vmem:[%s1 + $0xa18] sm:$0xff]
  %v358 = vld [vmem:[%s1 + $0xa20] sm:$0xff]
  %v359 = vld [vmem:[%s1 + $0xa28] sm:$0xff]
  %v360 = vld [vmem:[%s1 + $0xa30] sm:$0xff]
  %v361 = vld [vmem:[%s1 + $0xa38] sm:$0xff]
  %v362 = vld [vmem:[%s1 + $0xa40] sm:$0xff]
  %v363 = vld [vmem:[%s1 + $0xa48] sm:$0xff]
  %v364 = vld [vmem:[%s1 + $0xa50] sm:$0xff]
  %v365 = vld [vmem:[%s1 + $0xa58] sm:$0xff]
  %v366 = vld [vmem:[%s1 + $0xa60] sm:$0xff]
  %v367 = vld [vmem:[%s1 + $0xa68] sm:$0xff]
  %v368 = vld [vmem:[%s1 + $0xa70] sm:$0xff]
  %v369 = vld [vmem:[%s1 + $0xa78] sm:$0xff]
  %v370 = vld [vmem:[%s1 + $0xa80] sm:$0xff]
  %v371 = vld [vmem:[%s1 + $0xa88] sm:$0xff]
  %v372 = vld [vmem:[%s1 + $0xa90] sm:$0xff]
  %v373 = vld [vmem:[%s1 + $0xa98] sm:$0xff]
  %v374 = vld [vmem:[%s1 + $0xaa0] sm:$0xff]
  %v375 = vld [vmem:[%s1 + $0xaa8] sm:$0xff]
  %v376 = vld [vmem:[%s1 + $0xab0] sm:$0xff]
  %v377 = vld [vmem:[%s1 + $0xab8] sm:$0xff]
  %v378 = vld [vmem:[%s1 + $0xac0] sm:$0xff]
  %v379 = vld [vmem:[%s1 + $0xac8] sm:$0xff]
  %v380 = vld [vmem:[%s1 + $0xad0] sm:$0xff]
  %v381 = vld [vmem:[%s1 + $0xad8] sm:$0xff]
  %v382 = vld [vmem:[%s1 + $0xae0] sm:$0xff]
  %v383 = vld [vmem:[%s1 + $0xae8] sm:$0xff]
  %v384 = vld [vmem:[%s1 + $0xaf0] sm:$0xff]
  %v385 = vld [vmem:[%s1 + $0xaf8] sm:$0xff]
  %v386 = vld [vmem:[%s1 + $0xb00] sm:$0xff]
  %v387 = vld [vmem:[%s1 + $0xb08] sm:$0xff]
  %v388 = vld [vmem:[%s1 + $0xb10] sm:$0xff]
  %v389 = vld [vmem:[%s1 + $0xb18] sm:$0xff]
  %v390 = vld [vmem:[%s1 + $0xb20] sm:$0xff]
  %v391 = vld [vmem:[%s1 + $0xb28] sm:$0xff]
  %v392 = vld [vmem:[%s1 + $0xb30] sm:$0xff]
  %v393 = vld [vmem:[%s1 + $0xb38] sm:$0xff]
  %v394 = vld [vmem:[%s1 + $0xb40] sm:$0xff]
  %v395 = vld [vmem:[%s1 + $0xb48] sm:$0xff]
  %v396 = vld [vmem:[%s1 + $0xb50] sm:$0xff]
  %v397 = vld [vmem:[%s1 + $0xb58] sm:$0xff]
  %v398 = vld [vmem:[%s1 + $0xb60] sm:$0xff]
  %v399 = vld [vmem:[%s1 + $0xb68] sm:$0xff]
  %v400 = vld [vmem:[%s1 + $0xb70] sm:$0xff]
  %v401 = vld [vmem:[%s1 + $0xb78] sm:$0xff]
  %v402 = vld [vmem:[%s1 + $0xb80] sm:$0xff]
  %v403 = vld [vmem:[%s1 + $0xb88] sm:$0xff]
  %v404 = vld [vmem:[%s1 + $0xb90] sm:$0xff]
  %v405 = vld [vmem:[%s1 + $0xb98] sm:$0xff]
  %v406 = vld [vmem:[%s1 + $0xba0] sm:$0xff]
  %v407 = vld [vmem:[%s1 + $0xba8] sm:$0xff]
  %v408 = vld [vmem:[%s1 + $0xbb0] sm:$0xff]
  %v409 = vld [vmem:[%s1 + $0xbb8] sm:$0xff]
  %v410 = vld [vmem:[%s1 + $0xbc0] sm:$0xff]
  %v411 = vld [vmem:[%s1 + $0xbc8] sm:$0xff]
  %v412 = vld [vmem:[%s1 + $0xbd0] sm:$0xff]
  %v413 = vld [vmem:[%s1 + $0xbd8] sm:$0xff]
  %v414 = vld [vmem:[%s1 + $0xbe0] sm:$0xff]
  %v415 = vld [vmem:[%s1 + $0xbe8] sm:$0xff]
  %v416 = vld [vmem:[%s1 + $0xbf0] sm:$0xff]
  %v417 = vld [vmem:[%s1 + $0xbf8] sm:$0xff]
  %v418 = vld [vmem:[%s1 + $0xc00] sm:$0xff]
  %v419 = vld [vmem:[%s1 + $0xc08] sm:$0xff]
  %v420 = vld [vmem:[%s1 + $0xc10] sm:$0xff]
  %v421 = vld [vmem:[%s1 + $0xc18] sm:$0xff]
  %v422 = vld [vmem:[%s1 + $0xc20] sm:$0xff]
  %v423 = vld [vmem:[%s1 + $0xc28] sm:$0xff]
  %v424 = vld [vmem:[%s1 + $0xc30] sm:$0xff]
  %v425 = vld [vmem:[%s1 + $0xc38] sm:$0xff]
  %v426 = vld [vmem:[%s1 + $0xc40] sm:$0xff]
  %v427 = vld [vmem:[%s1 + $0xc48] sm:$0xff]
  %v428 = vld [vmem:[%s1 + $0xc50] sm:$0xff]
  %v429 = vld [vmem:[%s1 + $0xc58] sm:$0xff]
  %v430 = vld [vmem:[%s1 + $0xc60] sm:$0xff]
  %v431 = vld [vmem:[%s1 + $0xc68] sm:$0xff]
  %v432 = vld [vmem:[%s1 + $0xc70] sm:$0xff]
  %v433 = vld [vmem:[%s1 + $0xc78] sm:$0xff]
  %v434 = vld [vmem:[%s1 + $0xc80] sm:$0xff]
  %v435 = vld [vmem:[%s1 + $0xc88] sm:$0xff]
  %v436 = vld [vmem:[%s1 + $0xc90] sm:$0xff]
  %v437 = vld [vmem:[%s1 + $0xc98] sm:$0xff]
  %v438 = vld [vmem:[%s1 + $0xca0] sm:$0xff]
  %v439 = vld [vmem:[%s1 + $0xca8] sm:$0xff]
  %v440 = vld [vmem:[%s1 + $0xcb0] sm:$0xff]
  %v441 = vld [vmem:[%s1 + $0xcb8] sm:$0xff]
  %v442 = vld [vmem:[%s1 + $0xcc0] sm:$0xff]
  %v443 = vld [vmem:[%s1 + $0xcc8] sm:$0xff]
  %v444 = vld [vmem:[%s1 + $0xcd0] sm:$0xff]
  %v445 = vld [vmem:[%s1 + $0xcd8] sm:$0xff]
  %v446 = vld [vmem:[%s1 + $0xce0] sm:$0xff]
  %v447 = vld [vmem:[%s1 + $0xce8] sm:$0xff]
  %v448 = vld [vmem:[%s1 + $0xcf0] sm:$0xff]
  %v449 = vld [vmem:[%s1 + $0xcf8] sm:$0xff]
  %v450 = vld [vmem:[%s1 + $0xd00] sm:$0xff]
  %v451 = vld [vmem:[%s1 + $0xd08] sm:$0xff]
  %v452 = vld [vmem:[%s1 + $0xd10] sm:$0xff]
  %v453 = vld [vmem:[%s1 + $0xd18] sm:$0xff]
  %v454 = vld [vmem:[%s1 + $0xd20] sm:$0xff]
  %v455 = vld [vmem:[%s1 + $0xd28] sm:$0xff]
  %v456 = vld [vmem:[%s1 + $0xd30] sm:$0xff]
  %v457 = vld [vmem:[%s1 + $0xd38] sm:$0xff]
  %v458 = vld [vmem:[%s1 + $0xd40] sm:$0xff]
  %v459 = vld [vmem:[%s1 + $0xd48] sm:$0xff]
  %v460 = vld [vmem:[%s1 + $0xd50] sm:$0xff]
  %v461 = vld [vmem:[%s1 + $0xd58] sm:$0xff]
  %v462 = vld [vmem:[%s1 + $0xd60] sm:$0xff]
  %v463 = vld [vmem:[%s1 + $0xd68] sm:$0xff]
  %v464 = vld [vmem:[%s1 + $0xd70] sm:$0xff]
  %v465 = vld [vmem:[%s1 + $0xd78] sm:$0xff]
  %v466 = vld [vmem:[%s1 + $0xd80] sm:$0xff]
  %v467 = vld [vmem:[%s1 + $0xd88] sm:$0xff]
  %v468 = vld [vmem:[%s1 + $0xd90] sm:$0xff]
  %v469 = vld [vmem:[%s1 + $0xd98] sm:$0xff]
  %v470 = vld [vmem:[%s1 + $0xda0] sm:$0xff]
  %v471 = vld [vmem:[%s1 + $0xda8] sm:$0xff]
  %v472 = vld [vmem:[%s1 + $0xdb0] sm:$0xff]
  %v473 = vld [vmem:[%s1 + $0xdb8] sm:$0xff]
  %v474 = vld [vmem:[%s1 + $0xdc0] sm:$0xff]
  %v475 = vld [vmem:[%s1 + $0xdc8] sm:$0xff]
  %v476 = vld [vmem:[%s1 + $0xdd0] sm:$0xff]
  %v477 = vld [vmem:[%s1 + $0xdd8] sm:$0xff]
  %v478 = vld [vmem:[%s1 + $0xde0] sm:$0xff]
  %v479 = vld [vmem:[%s1 + $0xde8] sm:$0xff]
  %v480 = vld [vmem:[%s1 + $0xdf0] sm:$0xff]
  %v481 = vld [vmem:[%s1 + $0xdf8] sm:$0xff]
  %v482 = vld [vmem:[%s2] sm:$0xf]
  %v484 = vlaneseq
  %v485 = vshrl.u32 %v484, 7
  %v486 = vsub.s32 0, %v485
  %v487 = vrot.slane %v482, %v486
  %v488 = vlaneseq
  %v489 = vshrl.u32 %v488, 7
  %v490 = vsub.s32 1, %v489
  %v491 = vrot.slane %v482, %v490
  %v492 = vlaneseq
  %v493 = vshrl.u32 %v492, 7
  %v494 = vsub.s32 2, %v493
  %v495 = vrot.slane %v482, %v494
  %v496 = vlaneseq
  %v497 = vshrl.u32 %v496, 7
  %v498 = vsub.s32 3, %v497
  %v499 = vrot.slane %v482, %v498
  %504 = vmatprep.subr.mxu0 %v35
  %505 = vmatpush1.msra.mxu0 %v34
  %506 = vmatprep.subr.mxu0 %v39
  %507 = vmatpush1.msra.mxu0 %v38
  %508 = vmatprep.subr.mxu0 %v43
  %509 = vmatpush1.msra.mxu0 %v42
  %510 = vmatprep.subr.mxu0 %v47
  %511 = vmatpush1.msra.mxu0 %v46
  %512 = vmatprep.subr.mxu0 %v51
  %513 = vmatpush1.msra.mxu0 %v50
  %514 = vmatprep.subr.mxu0 %v55
  %515 = vmatpush1.msra.mxu0 %v54
  %516 = vmatprep.subr.mxu0 %v59
  %517 = vmatpush1.msra.mxu0 %v58
  %518 = vmatprep.subr.mxu0 %v63
  %519 = vmatpush1.msra.mxu0 %v62
  %520 = vmatprep.subr.mxu0 %v67
  %521 = vmatpush1.msra.mxu0 %v66
  %522 = vmatprep.subr.mxu0 %v71
  %523 = vmatpush1.msra.mxu0 %v70
  %524 = vmatprep.subr.mxu0 %v75
  %525 = vmatpush1.msra.mxu0 %v74
  %526 = vmatprep.subr.mxu0 %v79
  %527 = vmatpush1.msra.mxu0 %v78
  %528 = vmatprep.subr.mxu0 %v83
  %529 = vmatpush1.msra.mxu0 %v82
  %530 = vmatprep.subr.mxu0 %v87
  %531 = vmatpush1.msra.mxu0 %v86
  %532 = vmatprep.subr.mxu0 %v91
  %533 = vmatpush1.msra.mxu0 %v90
  %534 = vmatprep.subr.mxu0 %v95
  %535 = vmatpush1.msra.mxu0 %v94
  %536 = vmatprep.subr.mxu0 %v99
  %537 = vmatpush1.msra.mxu0 %v98
  %538 = vmatprep.subr.mxu0 %v103
  %539 = vmatpush1.msra.mxu0 %v102
  %540 = vmatprep.subr.mxu0 %v107
  %541 = vmatpush1.msra.mxu0 %v106
  %542 = vmatprep.subr.mxu0 %v111
  %543 = vmatpush1.msra.mxu0 %v110
  %544 = vmatprep.subr.mxu0 %v115
  %545 = vmatpush1.msra.mxu0 %v114
  %546 = vmatprep.subr.mxu0 %v119
  %547 = vmatpush1.msra.mxu0 %v118
  %548 = vmatprep.subr.mxu0 %v123
  %549 = vmatpush1.msra.mxu0 %v122
  %550 = vmatprep.subr.mxu0 %v127
  %551 = vmatpush1.msra.mxu0 %v126
  %552 = vmatprep.subr.mxu0 %v131
  %553 = vmatpush1.msra.mxu0 %v130
  %554 = vmatprep.subr.mxu0 %v135
  %555 = vmatpush1.msra.mxu0 %v134
  %556 = vmatprep.subr.mxu0 %v139
  %557 = vmatpush1.msra.mxu0 %v138
  %558 = vmatprep.subr.mxu0 %v143
  %559 = vmatpush1.msra.mxu0 %v142
  %560 = vmatprep.subr.mxu0 %v147
  %561 = vmatpush1.msra.mxu0 %v146
  %562 = vmatprep.subr.mxu0 %v151
  %563 = vmatpush1.msra.mxu0 %v150
  %564 = vmatprep.subr.mxu0 %v155
  %565 = vmatpush1.msra.mxu0 %v154
  %566 = vmatprep.subr.mxu0 %v159
  %567 = vmatpush1.msra.mxu0 %v158
  %568 = vmatprep.mubr.f32.mxu0 %v21
  %569 = vmatmul.mubr.f32.gmra.mrb[0].mxu0 %v20
  %v570 = vpop.f32.mrb[0].mxu0
  %v571 = vadd.f32 %v487, %v570
  %v572 = vpop.f32.mrb[0].mxu0
  %v573 = vadd.f32 %v491, %v572
  %574 = vmatprep.mubr.f32.mxu0 %v28
  %575 = vmatmul.mubr.f32.gmra.mrb[0].mxu0 %v27
  %v576 = vpop.f32.mrb[0].mxu0
  %v577 = vadd.f32 %v487, %v576
  %v578 = vpop.f32.mrb[0].mxu0
  %v579 = vadd.f32 %v491, %v578
  %580 = vdwg.mxu0
  %581 = vmatprep.subr.mxu0 %v163
  %582 = vmatpush1.msra.mxu0 %v162
  %583 = vmatprep.subr.mxu0 %v167
  %584 = vmatpush1.msra.mxu0 %v166
  %585 = vmatprep.subr.mxu0 %v171
  %586 = vmatpush1.msra.mxu0 %v170
  %587 = vmatprep.subr.mxu0 %v175
  %588 = vmatpush1.msra.mxu0 %v174
  %589 = vmatprep.subr.mxu0 %v179
  %590 = vmatpush1.msra.mxu0 %v178
  %591 = vmatprep.subr.mxu0 %v183
  %592 = vmatpush1.msra.mxu0 %v182
  %593 = vmatprep.subr.mxu0 %v187
  %594 = vmatpush1.msra.mxu0 %v186
  %595 = vmatprep.subr.mxu0 %v191
  %596 = vmatpush1.msra.mxu0 %v190
  %597 = vmatprep.subr.mxu0 %v195
  %598 = vmatpush1.msra.mxu0 %v194
  %599 = vmatprep.subr.mxu0 %v199
  %600 = vmatpush1.msra.mxu0 %v198
  %601 = vmatprep.subr.mxu0 %v203
  %602 = vmatpush1.msra.mxu0 %v202
  %603 = vmatprep.subr.mxu0 %v207
  %604 = vmatpush1.msra.mxu0 %v206
  %605 = vmatprep.subr.mxu0 %v211
  %606 = vmatpush1.msra.mxu0 %v210
  %607 = vmatprep.subr.mxu0 %v215
  %608 = vmatpush1.msra.mxu0 %v214
  %609 = vmatprep.subr.mxu0 %v219
  %610 = vmatpush1.msra.mxu0 %v218
  %611 = vmatprep.subr.mxu0 %v223
  %612 = vmatpush1.msra.mxu0 %v222
  %613 = vmatprep.subr.mxu0 %v227
  %614 = vmatpush1.msra.mxu0 %v226
  %615 = vmatprep.subr.mxu0 %v231
  %616 = vmatpush1.msra.mxu0 %v230
  %617 = vmatprep.subr.mxu0 %v235
  %618 = vmatpush1.msra.mxu0 %v234
  %619 = vmatprep.subr.mxu0 %v239
  %620 = vmatpush1.msra.mxu0 %v238
  %621 = vmatprep.subr.mxu0 %v243
  %622 = vmatpush1.msra.mxu0 %v242
  %623 = vmatprep.subr.mxu0 %v247
  %624 = vmatpush1.msra.mxu0 %v246
  %625 = vmatprep.subr.mxu0 %v251
  %626 = vmatpush1.msra.mxu0 %v250
  %627 = vmatprep.subr.mxu0 %v255
  %628 = vmatpush1.msra.mxu0 %v254
  %629 = vmatprep.subr.mxu0 %v259
  %630 = vmatpush1.msra.mxu0 %v258
  %631 = vmatprep.subr.mxu0 %v263
  %632 = vmatpush1.msra.mxu0 %v262
  %633 = vmatprep.subr.mxu0 %v267
  %634 = vmatpush1.msra.mxu0 %v266
  %635 = vmatprep.subr.mxu0 %v271
  %636 = vmatpush1.msra.mxu0 %v270
  %637 = vmatprep.subr.mxu0 %v275
  %638 = vmatpush1.msra.mxu0 %v274
  %639 = vmatprep.subr.mxu0 %v279
  %640 = vmatpush1.msra.mxu0 %v278
  %641 = vmatprep.subr.mxu0 %v283
  %642 = vmatpush1.msra.mxu0 %v282
  %643 = vmatprep.subr.mxu0 %v287
  %644 = vmatpush1.msra.mxu0 %v286
  %645 = vmatprep.mubr.f32.mxu0 %v23
  %646 = vmatmul.mubr.f32.gmra.mrb[0].mxu0 %v22
  %v647 = vpop.f32.mrb[0].mxu0
  %v648 = vadd.f32 %v571, %v647
  %v649 = vpop.f32.mrb[0].mxu0
  %v650 = vadd.f32 %v573, %v649
  %651 = vmatprep.mubr.f32.mxu0 %v30
  %652 = vmatmul.mubr.f32.gmra.mrb[0].mxu0 %v29
  %v653 = vpop.f32.mrb[0].mxu0
  %v654 = vadd.f32 %v577, %v653
  %v655 = vpop.f32.mrb[0].mxu0
  %v656 = vadd.f32 %v579, %v655
  %657 = vdwg.mxu0
  %658 = vmatprep.subr.mxu0 %v291
  %659 = vmatpush1.msra.mxu0 %v290
  %660 = vmatprep.subr.mxu0 %v295
  %661 = vmatpush1.msra.mxu0 %v294
  %662 = vmatprep.subr.mxu0 %v299
  %663 = vmatpush1.msra.mxu0 %v298
  %664 = vmatprep.subr.mxu0 %v303
  %665 = vmatpush1.msra.mxu0 %v302
  %666 = vmatprep.subr.mxu0 %v307
  %667 = vmatpush1.msra.mxu0 %v306
  %668 = vmatprep.subr.mxu0 %v311
  %669 = vmatpush1.msra.mxu0 %v310
  %670 = vmatprep.subr.mxu0 %v315
  %671 = vmatpush1.msra.mxu0 %v314
  %672 = vmatprep.subr.mxu0 %v319
  %673 = vmatpush1.msra.mxu0 %v318
  %674 = vmatprep.subr.mxu0 %v323
  %675 = vmatpush1.msra.mxu0 %v322
  %676 = vmatprep.subr.mxu0 %v327
  %677 = vmatpush1.msra.mxu0 %v326
  %678 = vmatprep.subr.mxu0 %v331
  %679 = vmatpush1.msra.mxu0 %v330
  %680 = vmatprep.subr.mxu0 %v335
  %681 = vmatpush1.msra.mxu0 %v334
  %682 = vmatprep.subr.mxu0 %v339
  %683 = vmatpush1.msra.mxu0 %v338
  %684 = vmatprep.subr.mxu0 %v343
  %685 = vmatpush1.msra.mxu0 %v342
  %686 = vmatprep.subr.mxu0 %v347
  %687 = vmatpush1.msra.mxu0 %v346
  %688 = vmatprep.subr.mxu0 %v351
  %689 = vmatpush1.msra.mxu0 %v350
  %690 = vmatprep.subr.mxu0 %v355
  %691 = vmatpush1.msra.mxu0 %v354
  %692 = vmatprep.subr.mxu0 %v359
  %693 = vmatpush1.msra.mxu0 %v358
  %694 = vmatprep.subr.mxu0 %v363
  %695 = vmatpush1.msra.mxu0 %v362
  %696 = vmatprep.subr.mxu0 %v367
  %697 = vmatpush1.msra.mxu0 %v366
  %698 = vmatprep.subr.mxu0 %v371
  %699 = vmatpush1.msra.mxu0 %v370
  %700 = vmatprep.subr.mxu0 %v375
  %701 = vmatpush1.msra.mxu0 %v374
  %702 = vmatprep.subr.mxu0 %v379
  %703 = vmatpush1.msra.mxu0 %v378
  %704 = vmatprep.subr.mxu0 %v383
  %705 = vmatpush1.msra.mxu0 %v382
  %706 = vmatprep.subr.mxu0 %v387
  %707 = vmatpush1.msra.mxu0 %v386
  %708 = vmatprep.subr.mxu0 %v391
  %709 = vmatpush1.msra.mxu0 %v390
  %710 = vmatprep.subr.mxu0 %v395
  %711 = vmatpush1.msra.mxu0 %v394
  %712 = vmatprep.subr.mxu0 %v399
  %713 = vmatpush1.msra.mxu0 %v398
  %714 = vmatprep.subr.mxu0 %v403
  %715 = vmatpush1.msra.mxu0 %v402
  %716 = vmatprep.subr.mxu0 %v407
  %717 = vmatpush1.msra.mxu0 %v406
  %718 = vmatprep.subr.mxu0 %v411
  %719 = vmatpush1.msra.mxu0 %v410
  %720 = vmatprep.subr.mxu0 %v415
  %721 = vmatpush1.msra.mxu0 %v414
  %722 = vmatprep.mubr.f32.mxu0 %v25
  %723 = vmatmul.mubr.f32.gmra.mrb[0].mxu0 %v24
  %v724 = vpop.f32.mrb[0].mxu0
  %v725 = vadd.f32 %v648, %v724
  %v726 = vpop.f32.mrb[0].mxu0
  %v727 = vadd.f32 %v650, %v726
  %728 = vmatprep.mubr.f32.mxu0 %v32
  %729 = vmatmul.mubr.f32.gmra.mrb[0].mxu0 %v31
  %v730 = vpop.f32.mrb[0].mxu0
  %v731 = vadd.f32 %v654, %v730
  %v732 = vpop.f32.mrb[0].mxu0
  %v733 = vadd.f32 %v656, %v732
  %734 = vdwg.mxu0
  %735 = vmatprep.subr.mxu0 %v419
  %736 = vmatpush1.msra.mxu0 %v418
  %737 = vmatprep.subr.mxu0 %v423
  %738 = vmatpush1.msra.mxu0 %v422
  %739 = vmatprep.subr.mxu0 %v427
  %740 = vmatpush1.msra.mxu0 %v426
  %741 = vmatprep.subr.mxu0 %v431
  %742 = vmatpush1.msra.mxu0 %v430
  %743 = vmatprep.subr.mxu0 %v435
  %744 = vmatpush1.msra.mxu0 %v434
  %745 = vmatprep.subr.mxu0 %v439
  %746 = vmatpush1.msra.mxu0 %v438
  %747 = vmatprep.subr.mxu0 %v443
  %748 = vmatpush1.msra.mxu0 %v442
  %749 = vmatprep.subr.mxu0 %v447
  %750 = vmatpush1.msra.mxu0 %v446
  %751 = vmatprep.subr.mxu0 %v451
  %752 = vmatpush1.msra.mxu0 %v450
  %753 = vmatprep.subr.mxu0 %v455
  %754 = vmatpush1.msra.mxu0 %v454
  %755 = vmatprep.subr.mxu0 %v459
  %756 = vmatpush1.msra.mxu0 %v458
  %757 = vmatprep.subr.mxu0 %v463
  %758 = vmatpush1.msra.mxu0 %v462
  %759 = vmatprep.subr.mxu0 %v467
  %760 = vmatpush1.msra.mxu0 %v466
  %761 = vmatprep.subr.mxu0 %v471
  %762 = vmatpush1.msra.mxu0 %v470
  %763 = vmatprep.subr.mxu0 %v475
  %764 = vmatpush1.msra.mxu0 %v474
  %765 = vmatprep.subr.mxu0 %v479
  %766 = vmatpush1.msra.mxu0 %v478
  %767 = vmatprep.subr.mxu0 0.0
  %768 = vmatpush1.msra.mxu0 0.0
  %769 = vmatprep.subr.mxu0 0.0
  %770 = vmatpush1.msra.mxu0 0.0
  %771 = vmatprep.subr.mxu0 0.0
  %772 = vmatpush1.msra.mxu0 0.0
  %773 = vmatprep.subr.mxu0 0.0
  %774 = vmatpush1.msra.mxu0 0.0
  %775 = vmatprep.subr.mxu0 0.0
  %776 = vmatpush1.msra.mxu0 0.0
  %777 = vmatprep.subr.mxu0 0.0
  %778 = vmatpush1.msra.mxu0 0.0
  %779 = vmatprep.subr.mxu0 0.0
  %780 = vmatpush1.msra.mxu0 0.0
  %781 = vmatprep.subr.mxu0 0.0
  %782 = vmatpush1.msra.mxu0 0.0
  %783 = vmatprep.subr.mxu0 0.0
  %784 = vmatpush1.msra.mxu0 0.0
  %785 = vmatprep.subr.mxu0 0.0
  %786 = vmatpush1.msra.mxu0 0.0
  %787 = vmatprep.subr.mxu0 0.0
  %788 = vmatpush1.msra.mxu0 0.0
  %789 = vmatprep.subr.mxu0 0.0
  %790 = vmatpush1.msra.mxu0 0.0
  %791 = vmatprep.subr.mxu0 0.0
  %792 = vmatpush1.msra.mxu0 0.0
  %793 = vmatprep.subr.mxu0 0.0
  %794 = vmatpush1.msra.mxu0 0.0
  %795 = vmatprep.subr.mxu0 0.0
  %796 = vmatpush1.msra.mxu0 0.0
  %797 = vmatprep.subr.mxu0 0.0
  %798 = vmatpush1.msra.mxu0 0.0
  %799 = vmatprep.mubr.f32.mxu0 0.0
  %800 = vmatmul.mubr.f32.gmra.mrb[0].mxu0 %v26
  %v801 = vpop.f32.mrb[0].mxu0
  %v802 = vadd.f32 %v725, %v801
  %v803 = vpop.f32.mrb[0].mxu0
  %v804 = vadd.f32 %v727, %v803
  %805 = vmatprep.mubr.f32.mxu0 0.0
  %806 = vmatmul.mubr.f32.gmra.mrb[0].mxu0 %v33
  %v807 = vpop.f32.mrb[0].mxu0
  %v808 = vadd.f32 %v731, %v807
  %v809 = vpop.f32.mrb[0].mxu0
  %v810 = vadd.f32 %v733, %v809
  %811 = vdwg.mxu0
  %812 = vmatprep.subr.mxu0 %v37
  %813 = vmatpush1.msra.mxu0 %v36
  %814 = vmatprep.subr.mxu0 %v41
  %815 = vmatpush1.msra.mxu0 %v40
  %816 = vmatprep.subr.mxu0 %v45
  %817 = vmatpush1.msra.mxu0 %v44
  %818 = vmatprep.subr.mxu0 %v49
  %819 = vmatpush1.msra.mxu0 %v48
  %820 = vmatprep.subr.mxu0 %v53
  %821 = vmatpush1.msra.mxu0 %v52
  %822 = vmatprep.subr.mxu0 %v57
  %823 = vmatpush1.msra.mxu0 %v56
  %824 = vmatprep.subr.mxu0 %v61
  %825 = vmatpush1.msra.mxu0 %v60
  %826 = vmatprep.subr.mxu0 %v65
  %827 = vmatpush1.msra.mxu0 %v64
  %828 = vmatprep.subr.mxu0 %v69
  %829 = vmatpush1.msra.mxu0 %v68
  %830 = vmatprep.subr.mxu0 %v73
  %831 = vmatpush1.msra.mxu0 %v72
  %832 = vmatprep.subr.mxu0 %v77
  %833 = vmatpush1.msra.mxu0 %v76
  %834 = vmatprep.subr.mxu0 %v81
  %835 = vmatpush1.msra.mxu0 %v80
  %836 = vmatprep.subr.mxu0 %v85
  %837 = vmatpush1.msra.mxu0 %v84
  %838 = vmatprep.subr.mxu0 %v89
  %839 = vmatpush1.msra.mxu0 %v88
  %840 = vmatprep.subr.mxu0 %v93
  %841 = vmatpush1.msra.mxu0 %v92
  %842 = vmatprep.subr.mxu0 %v97
  %843 = vmatpush1.msra.mxu0 %v96
  %844 = vmatprep.subr.mxu0 %v101
  %845 = vmatpush1.msra.mxu0 %v100
  %846 = vmatprep.subr.mxu0 %v105
  %847 = vmatpush1.msra.mxu0 %v104
  %848 = vmatprep.subr.mxu0 %v109
  %849 = vmatpush1.msra.mxu0 %v108
  %850 = vmatprep.subr.mxu0 %v113
  %851 = vmatpush1.msra.mxu0 %v112
  %852 = vmatprep.subr.mxu0 %v117
  %853 = vmatpush1.msra.mxu0 %v116
  %854 = vmatprep.subr.mxu0 %v121
  %855 = vmatpush1.msra.mxu0 %v120
  %856 = vmatprep.subr.mxu0 %v125
  %857 = vmatpush1.msra.mxu0 %v124
  %858 = vmatprep.subr.mxu0 %v129
  %859 = vmatpush1.msra.mxu0 %v128
  %860 = vmatprep.subr.mxu0 %v133
  %861 = vmatpush1.msra.mxu0 %v132
  %862 = vmatprep.subr.mxu0 %v137
  %863 = vmatpush1.msra.mxu0 %v136
  %864 = vmatprep.subr.mxu0 %v141
  %865 = vmatpush1.msra.mxu0 %v140
  %866 = vmatprep.subr.mxu0 %v145
  %867 = vmatpush1.msra.mxu0 %v144
  %868 = vmatprep.subr.mxu0 %v149
  %869 = vmatpush1.msra.mxu0 %v148
  %870 = vmatprep.subr.mxu0 %v153
  %871 = vmatpush1.msra.mxu0 %v152
  %872 = vmatprep.subr.mxu0 %v157
  %873 = vmatpush1.msra.mxu0 %v156
  %874 = vmatprep.subr.mxu0 %v161
  %875 = vmatpush1.msra.mxu0 %v160
  %876 = vmatprep.mubr.f32.mxu0 %v21
  %877 = vmatmul.mubr.f32.gmra.mrb[0].mxu0 %v20
  %v878 = vpop.f32.mrb[0].mxu0
  %v879 = vadd.f32 %v495, %v878
  %v880 = vpop.f32.mrb[0].mxu0
  %v881 = vadd.f32 %v499, %v880
  %882 = vmatprep.mubr.f32.mxu0 %v28
  %883 = vmatmul.mubr.f32.gmra.mrb[0].mxu0 %v27
  %v884 = vpop.f32.mrb[0].mxu0
  %v885 = vadd.f32 %v495, %v884
  %v886 = vpop.f32.mrb[0].mxu0
  %v887 = vadd.f32 %v499, %v886
  %888 = vdwg.mxu0
  %889 = vmatprep.subr.mxu0 %v165
  %890 = vmatpush1.msra.mxu0 %v164
  %891 = vmatprep.subr.mxu0 %v169
  %892 = vmatpush1.msra.mxu0 %v168
  %893 = vmatprep.subr.mxu0 %v173
  %894 = vmatpush1.msra.mxu0 %v172
  %895 = vmatprep.subr.mxu0 %v177
  %896 = vmatpush1.msra.mxu0 %v176
  %897 = vmatprep.subr.mxu0 %v181
  %898 = vmatpush1.msra.mxu0 %v180
  %899 = vmatprep.subr.mxu0 %v185
  %900 = vmatpush1.msra.mxu0 %v184
  %901 = vmatprep.subr.mxu0 %v189
  %902 = vmatpush1.msra.mxu0 %v188
  %903 = vmatprep.subr.mxu0 %v193
  %904 = vmatpush1.msra.mxu0 %v192
  %905 = vmatprep.subr.mxu0 %v197
  %906 = vmatpush1.msra.mxu0 %v196
  %907 = vmatprep.subr.mxu0 %v201
  %908 = vmatpush1.msra.mxu0 %v200
  %909 = vmatprep.subr.mxu0 %v205
  %910 = vmatpush1.msra.mxu0 %v204
  %911 = vmatprep.subr.mxu0 %v209
  %912 = vmatpush1.msra.mxu0 %v208
  %913 = vmatprep.subr.mxu0 %v213
  %914 = vmatpush1.msra.mxu0 %v212
  %915 = vmatprep.subr.mxu0 %v217
  %916 = vmatpush1.msra.mxu0 %v216
  %917 = vmatprep.subr.mxu0 %v221
  %918 = vmatpush1.msra.mxu0 %v220
  %919 = vmatprep.subr.mxu0 %v225
  %920 = vmatpush1.msra.mxu0 %v224
  %921 = vmatprep.subr.mxu0 %v229
  %922 = vmatpush1.msra.mxu0 %v228
  %923 = vmatprep.subr.mxu0 %v233
  %924 = vmatpush1.msra.mxu0 %v232
  %925 = vmatprep.subr.mxu0 %v237
  %926 = vmatpush1.msra.mxu0 %v236
  %927 = vmatprep.subr.mxu0 %v241
  %928 = vmatpush1.msra.mxu0 %v240
  %929 = vmatprep.subr.mxu0 %v245
  %930 = vmatpush1.msra.mxu0 %v244
  %931 = vmatprep.subr.mxu0 %v249
  %932 = vmatpush1.msra.mxu0 %v248
  %933 = vmatprep.subr.mxu0 %v253
  %934 = vmatpush1.msra.mxu0 %v252
  %935 = vmatprep.subr.mxu0 %v257
  %936 = vmatpush1.msra.mxu0 %v256
  %937 = vmatprep.subr.mxu0 %v261
  %938 = vmatpush1.msra.mxu0 %v260
  %939 = vmatprep.subr.mxu0 %v265
  %940 = vmatpush1.msra.mxu0 %v264
  %941 = vmatprep.subr.mxu0 %v269
  %942 = vmatpush1.msra.mxu0 %v268
  %943 = vmatprep.subr.mxu0 %v273
  %944 = vmatpush1.msra.mxu0 %v272
  %945 = vmatprep.subr.mxu0 %v277
  %946 = vmatpush1.msra.mxu0 %v276
  %947 = vmatprep.subr.mxu0 %v281
  %948 = vmatpush1.msra.mxu0 %v280
  %949 = vmatprep.subr.mxu0 %v285
  %950 = vmatpush1.msra.mxu0 %v284
  %951 = vmatprep.subr.mxu0 %v289
  %952 = vmatpush1.msra.mxu0 %v288
  %953 = vmatprep.mubr.f32.mxu0 %v23
  %954 = vmatmul.mubr.f32.gmra.mrb[0].mxu0 %v22
  %v955 = vpop.f32.mrb[0].mxu0
  %v956 = vadd.f32 %v879, %v955
  %v957 = vpop.f32.mrb[0].mxu0
  %v958 = vadd.f32 %v881, %v957
  %959 = vmatprep.mubr.f32.mxu0 %v30
  %960 = vmatmul.mubr.f32.gmra.mrb[0].mxu0 %v29
  %v961 = vpop.f32.mrb[0].mxu0
  %v962 = vadd.f32 %v885, %v961
  %v963 = vpop.f32.mrb[0].mxu0
  %v964 = vadd.f32 %v887, %v963
  %965 = vdwg.mxu0
  %966 = vmatprep.subr.mxu0 %v293
  %967 = vmatpush1.msra.mxu0 %v292
  %968 = vmatprep.subr.mxu0 %v297
  %969 = vmatpush1.msra.mxu0 %v296
  %970 = vmatprep.subr.mxu0 %v301
  %971 = vmatpush1.msra.mxu0 %v300
  %972 = vmatprep.subr.mxu0 %v305
  %973 = vmatpush1.msra.mxu0 %v304
  %974 = vmatprep.subr.mxu0 %v309
  %975 = vmatpush1.msra.mxu0 %v308
  %976 = vmatprep.subr.mxu0 %v313
  %977 = vmatpush1.msra.mxu0 %v312
  %978 = vmatprep.subr.mxu0 %v317
  %979 = vmatpush1.msra.mxu0 %v316
  %980 = vmatprep.subr.mxu0 %v321
  %981 = vmatpush1.msra.mxu0 %v320
  %982 = vmatprep.subr.mxu0 %v325
  %983 = vmatpush1.msra.mxu0 %v324
  %984 = vmatprep.subr.mxu0 %v329
  %985 = vmatpush1.msra.mxu0 %v328
  %986 = vmatprep.subr.mxu0 %v333
  %987 = vmatpush1.msra.mxu0 %v332
  %988 = vmatprep.subr.mxu0 %v337
  %989 = vmatpush1.msra.mxu0 %v336
  %990 = vmatprep.subr.mxu0 %v341
  %991 = vmatpush1.msra.mxu0 %v340
  %992 = vmatprep.subr.mxu0 %v345
  %993 = vmatpush1.msra.mxu0 %v344
  %994 = vmatprep.subr.mxu0 %v349
  %995 = vmatpush1.msra.mxu0 %v348
  %996 = vmatprep.subr.mxu0 %v353
  %997 = vmatpush1.msra.mxu0 %v352
  %998 = vmatprep.subr.mxu0 %v357
  %999 = vmatpush1.msra.mxu0 %v356
  %1000 = vmatprep.subr.mxu0 %v361
  %1001 = vmatpush1.msra.mxu0 %v360
  %1002 = vmatprep.subr.mxu0 %v365
  %1003 = vmatpush1.msra.mxu0 %v364
  %1004 = vmatprep.subr.mxu0 %v369
  %1005 = vmatpush1.msra.mxu0 %v368
  %1006 = vmatprep.subr.mxu0 %v373
  %1007 = vmatpush1.msra.mxu0 %v372
  %1008 = vmatprep.subr.mxu0 %v377
  %1009 = vmatpush1.msra.mxu0 %v376
  %1010 = vmatprep.subr.mxu0 %v381
  %1011 = vmatpush1.msra.mxu0 %v380
  %1012 = vmatprep.subr.mxu0 %v385
  %1013 = vmatpush1.msra.mxu0 %v384
  %1014 = vmatprep.subr.mxu0 %v389
  %1015 = vmatpush1.msra.mxu0 %v388
  %1016 = vmatprep.subr.mxu0 %v393
  %1017 = vmatpush1.msra.mxu0 %v392
  %1018 = vmatprep.subr.mxu0 %v397
  %1019 = vmatpush1.msra.mxu0 %v396
  %1020 = vmatprep.subr.mxu0 %v401
  %1021 = vmatpush1.msra.mxu0 %v400
  %1022 = vmatprep.subr.mxu0 %v405
  %1023 = vmatpush1.msra.mxu0 %v404
  %1024 = vmatprep.subr.mxu0 %v409
  %1025 = vmatpush1.msra.mxu0 %v408
  %1026 = vmatprep.subr.mxu0 %v413
  %1027 = vmatpush1.msra.mxu0 %v412
  %1028 = vmatprep.subr.mxu0 %v417
  %1029 = vmatpush1.msra.mxu0 %v416
  %1030 = vmatprep.mubr.f32.mxu0 %v25
  %1031 = vmatmul.mubr.f32.gmra.mrb[0].mxu0 %v24
  %v1032 = vpop.f32.mrb[0].mxu0
  %v1033 = vadd.f32 %v956, %v1032
  %v1034 = vpop.f32.mrb[0].mxu0
  %v1035 = vadd.f32 %v958, %v1034
  %1036 = vmatprep.mubr.f32.mxu0 %v32
  %1037 = vmatmul.mubr.f32.gmra.mrb[0].mxu0 %v31
  %v1038 = vpop.f32.mrb[0].mxu0
  %v1039 = vadd.f32 %v962, %v1038
  %v1040 = vpop.f32.mrb[0].mxu0
  %v1041 = vadd.f32 %v964, %v1040
  %1042 = vdwg.mxu0
  %1043 = vmatprep.subr.mxu0 %v421
  %1044 = vmatpush1.msra.mxu0 %v420
  %1045 = vmatprep.subr.mxu0 %v425
  %1046 = vmatpush1.msra.mxu0 %v424
  %1047 = vmatprep.subr.mxu0 %v429
  %1048 = vmatpush1.msra.mxu0 %v428
  %1049 = vmatprep.subr.mxu0 %v433
  %1050 = vmatpush1.msra.mxu0 %v432
  %1051 = vmatprep.subr.mxu0 %v437
  %1052 = vmatpush1.msra.mxu0 %v436
  %1053 = vmatprep.subr.mxu0 %v441
  %1054 = vmatpush1.msra.mxu0 %v440
  %1055 = vmatprep.subr.mxu0 %v445
  %1056 = vmatpush1.msra.mxu0 %v444
  %1057 = vmatprep.subr.mxu0 %v449
  %1058 = vmatpush1.msra.mxu0 %v448
  %1059 = vmatprep.subr.mxu0 %v453
  %1060 = vmatpush1.msra.mxu0 %v452
  %1061 = vmatprep.subr.mxu0 %v457
  %1062 = vmatpush1.msra.mxu0 %v456
  %1063 = vmatprep.subr.mxu0 %v461
  %1064 = vmatpush1.msra.mxu0 %v460
  %1065 = vmatprep.subr.mxu0 %v465
  %1066 = vmatpush1.msra.mxu0 %v464
  %1067 = vmatprep.subr.mxu0 %v469
  %1068 = vmatpush1.msra.mxu0 %v468
  %1069 = vmatprep.subr.mxu0 %v473
  %1070 = vmatpush1.msra.mxu0 %v472
  %1071 = vmatprep.subr.mxu0 %v477
  %1072 = vmatpush1.msra.mxu0 %v476
  %1073 = vmatprep.subr.mxu0 %v481
  %1074 = vmatpush1.msra.mxu0 %v480
  %1075 = vmatprep.subr.mxu0 0.0
  %1076 = vmatpush1.msra.mxu0 0.0
  %1077 = vmatprep.subr.mxu0 0.0
  %1078 = vmatpush1.msra.mxu0 0.0
  %1079 = vmatprep.subr.mxu0 0.0
  %1080 = vmatpush1.msra.mxu0 0.0
  %1081 = vmatprep.subr.mxu0 0.0
  %1082 = vmatpush1.msra.mxu0 0.0
  %1083 = vmatprep.subr.mxu0 0.0
  %1084 = vmatpush1.msra.mxu0 0.0
  %1085 = vmatprep.subr.mxu0 0.0
  %1086 = vmatpush1.msra.mxu0 0.0
  %1087 = vmatprep.subr.mxu0 0.0
  %1088 = vmatpush1.msra.mxu0 0.0
  %1089 = vmatprep.subr.mxu0 0.0
  %1090 = vmatpush1.msra.mxu0 0.0
  %1091 = vmatprep.subr.mxu0 0.0
  %1092 = vmatpush1.msra.mxu0 0.0
  %1093 = vmatprep.subr.mxu0 0.0
  %1094 = vmatpush1.msra.mxu0 0.0
  %1095 = vmatprep.subr.mxu0 0.0
  %1096 = vmatpush1.msra.mxu0 0.0
  %1097 = vmatprep.subr.mxu0 0.0
  %1098 = vmatpush1.msra.mxu0 0.0
  %1099 = vmatprep.subr.mxu0 0.0
  %1100 = vmatpush1.msra.mxu0 0.0
  %1101 = vmatprep.subr.mxu0 0.0
  %1102 = vmatpush1.msra.mxu0 0.0
  %1103 = vmatprep.subr.mxu0 0.0
  %1104 = vmatpush1.msra.mxu0 0.0
  %1105 = vmatprep.subr.mxu0 0.0
  %1106 = vmatpush1.msra.mxu0 0.0
  %1107 = vmatprep.mubr.f32.mxu0 0.0
  %1108 = vmatmul.mubr.f32.gmra.mrb[0].mxu0 %v26
  %v1109 = vpop.f32.mrb[0].mxu0
  %v1110 = vadd.f32 %v1033, %v1109
  %v1111 = vpop.f32.mrb[0].mxu0
  %v1112 = vadd.f32 %v1035, %v1111
  %1113 = vmatprep.mubr.f32.mxu0 0.0
  %1114 = vmatmul.mubr.f32.gmra.mrb[0].mxu0 %v33
  %v1115 = vpop.f32.mrb[0].mxu0
  %v1116 = vadd.f32 %v1039, %v1115
  %v1117 = vpop.f32.mrb[0].mxu0
  %v1118 = vadd.f32 %v1041, %v1117
  %1119 = vdwg.mxu0
  %v1120 = vmax.f32 %v802, 0.0
  %v1121 = vmax.f32 %v804, 0.0
  %v1122 = vmax.f32 %v1110, 0.0
  %v1123 = vmax.f32 %v1112, 0.0
  %v1124 = vmax.f32 %v808, 0.0
  %v1125 = vmax.f32 %v810, 0.0
  %v1126 = vmax.f32 %v1116, 0.0
  %v1127 = vmax.f32 %v1118, 0.0
  %v1128 = vld [vmem:[%s3] sm:$0xff]
  %v1129 = vld [vmem:[%s3 + $0x8] sm:$0xff]
  %v1130 = vld [vmem:[%s3 + $0x10] sm:$0xff]
  %v1131 = vld [vmem:[%s3 + $0x18] sm:$0xff]
  %v1132 = vld [vmem:[%s3 + $0x20] sm:$0xff]
  %v1133 = vld [vmem:[%s3 + $0x28] sm:$0xff]
  %v1134 = vld [vmem:[%s3 + $0x30] sm:$0xff]
  %v1135 = vld [vmem:[%s3 + $0x38] sm:$0xff]
  %v1136 = vld [vmem:[%s3 + $0x40] sm:$0xff]
  %v1137 = vld [vmem:[%s3 + $0x48] sm:$0xff]
  %v1138 = vld [vmem:[%s3 + $0x50] sm:$0xff]
  %v1139 = vld [vmem:[%s3 + $0x58] sm:$0xff]
  %v1140 = vld [vmem:[%s3 + $0x60] sm:$0xff]
  %v1141 = vld [vmem:[%s3 + $0x68] sm:$0xff]
  %v1142 = vld [vmem:[%s3 + $0x70] sm:$0xff]
  %v1143 = vld [vmem:[%s3 + $0x78] sm:$0xff]
  %v1144 = vld [vmem:[%s3 + $0x80] sm:$0xff]
  %v1145 = vld [vmem:[%s3 + $0x88] sm:$0xff]
  %v1146 = vld [vmem:[%s3 + $0x90] sm:$0xff]
  %v1147 = vld [vmem:[%s3 + $0x98] sm:$0xff]
  %v1148 = vld [vmem:[%s3 + $0xa0] sm:$0xff]
  %v1149 = vld [vmem:[%s3 + $0xa8] sm:$0xff]
  %v1150 = vld [vmem:[%s3 + $0xb0] sm:$0xff]
  %v1151 = vld [vmem:[%s3 + $0xb8] sm:$0xff]
  %v1152 = vld [vmem:[%s3 + $0xc0] sm:$0xff]
  %v1153 = vld [vmem:[%s3 + $0xc8] sm:$0xff]
  %v1154 = vld [vmem:[%s3 + $0xd0] sm:$0xff]
  %v1155 = vld [vmem:[%s3 + $0xd8] sm:$0xff]
  %v1156 = vld [vmem:[%s3 + $0xe0] sm:$0xff]
  %v1157 = vld [vmem:[%s3 + $0xe8] sm:$0xff]
  %v1158 = vld [vmem:[%s3 + $0xf0] sm:$0xff]
  %v1159 = vld [vmem:[%s3 + $0xf8] sm:$0xff]
  %v1160 = vld [vmem:[%s3 + $0x100] sm:$0xff]
  %v1161 = vld [vmem:[%s3 + $0x108] sm:$0xff]
  %v1162 = vld [vmem:[%s3 + $0x110] sm:$0xff]
  %v1163 = vld [vmem:[%s3 + $0x118] sm:$0xff]
  %v1164 = vld [vmem:[%s3 + $0x120] sm:$0xff]
  %v1165 = vld [vmem:[%s3 + $0x128] sm:$0xff]
  %v1166 = vld [vmem:[%s3 + $0x130] sm:$0xff]
  %v1167 = vld [vmem:[%s3 + $0x138] sm:$0xff]
  %v1168 = vld [vmem:[%s3 + $0x140] sm:$0xff]
  %v1169 = vld [vmem:[%s3 + $0x148] sm:$0xff]
  %v1170 = vld [vmem:[%s3 + $0x150] sm:$0xff]
  %v1171 = vld [vmem:[%s3 + $0x158] sm:$0xff]
  %v1172 = vld [vmem:[%s3 + $0x160] sm:$0xff]
  %v1173 = vld [vmem:[%s3 + $0x168] sm:$0xff]
  %v1174 = vld [vmem:[%s3 + $0x170] sm:$0xff]
  %v1175 = vld [vmem:[%s3 + $0x178] sm:$0xff]
  %v1176 = vld [vmem:[%s3 + $0x180] sm:$0xff]
  %v1177 = vld [vmem:[%s3 + $0x188] sm:$0xff]
  %v1178 = vld [vmem:[%s3 + $0x190] sm:$0xff]
  %v1179 = vld [vmem:[%s3 + $0x198] sm:$0xff]
  %v1180 = vld [vmem:[%s3 + $0x1a0] sm:$0xff]
  %v1181 = vld [vmem:[%s3 + $0x1a8] sm:$0xff]
  %v1182 = vld [vmem:[%s3 + $0x1b0] sm:$0xff]
  %v1183 = vld [vmem:[%s3 + $0x1b8] sm:$0xff]
  %v1184 = vld [vmem:[%s3 + $0x1c0] sm:$0xff]
  %v1185 = vld [vmem:[%s3 + $0x1c8] sm:$0xff]
  %v1186 = vld [vmem:[%s3 + $0x1d0] sm:$0xff]
  %v1187 = vld [vmem:[%s3 + $0x1d8] sm:$0xff]
  %v1188 = vld [vmem:[%s3 + $0x1e0] sm:$0xff]
  %v1189 = vld [vmem:[%s3 + $0x1e8] sm:$0xff]
  %v1190 = vld [vmem:[%s3 + $0x1f0] sm:$0xff]
  %v1191 = vld [vmem:[%s3 + $0x1f8] sm:$0xff]
  %v1192 = vld [vmem:[%s4] sm:$0x1]
  %v1194 = vlaneseq
  %v1195 = vshrl.u32 %v1194, 7
  %v1196 = vsub.s32 0, %v1195
  %v1197 = vrot.slane %v1192, %v1196
  %1199 = vmatprep.subr.mxu0 0.0
  %1200 = vmatpush1.msra.mxu0 %v1128
  %1201 = vmatprep.subr.mxu0 0.0
  %1202 = vmatpush1.msra.mxu0 %v1129
  %1203 = vmatprep.subr.mxu0 0.0
  %1204 = vmatpush1.msra.mxu0 %v1130
  %1205 = vmatprep.subr.mxu0 0.0
  %1206 = vmatpush1.msra.mxu0 %v1131
  %1207 = vmatprep.subr.mxu0 0.0
  %1208 = vmatpush1.msra.mxu0 %v1132
  %1209 = vmatprep.subr.mxu0 0.0
  %1210 = vmatpush1.msra.mxu0 %v1133
  %1211 = vmatprep.subr.mxu0 0.0
  %1212 = vmatpush1.msra.mxu0 %v1134
  %1213 = vmatprep.subr.mxu0 0.0
  %1214 = vmatpush1.msra.mxu0 %v1135
  %1215 = vmatprep.subr.mxu0 0.0
  %1216 = vmatpush1.msra.mxu0 %v1136
  %1217 = vmatprep.subr.mxu0 0.0
  %1218 = vmatpush1.msra.mxu0 %v1137
  %1219 = vmatprep.subr.mxu0 0.0
  %1220 = vmatpush1.msra.mxu0 %v1138
  %1221 = vmatprep.subr.mxu0 0.0
  %1222 = vmatpush1.msra.mxu0 %v1139
  %1223 = vmatprep.subr.mxu0 0.0
  %1224 = vmatpush1.msra.mxu0 %v1140
  %1225 = vmatprep.subr.mxu0 0.0
  %1226 = vmatpush1.msra.mxu0 %v1141
  %1227 = vmatprep.subr.mxu0 0.0
  %1228 = vmatpush1.msra.mxu0 %v1142
  %1229 = vmatprep.subr.mxu0 0.0
  %1230 = vmatpush1.msra.mxu0 %v1143
  %1231 = vmatprep.subr.mxu0 0.0
  %1232 = vmatpush1.msra.mxu0 %v1144
  %1233 = vmatprep.subr.mxu0 0.0
  %1234 = vmatpush1.msra.mxu0 %v1145
  %1235 = vmatprep.subr.mxu0 0.0
  %1236 = vmatpush1.msra.mxu0 %v1146
  %1237 = vmatprep.subr.mxu0 0.0
  %1238 = vmatpush1.msra.mxu0 %v1147
  %1239 = vmatprep.subr.mxu0 0.0
  %1240 = vmatpush1.msra.mxu0 %v1148
  %1241 = vmatprep.subr.mxu0 0.0
  %1242 = vmatpush1.msra.mxu0 %v1149
  %1243 = vmatprep.subr.mxu0 0.0
  %1244 = vmatpush1.msra.mxu0 %v1150
  %1245 = vmatprep.subr.mxu0 0.0
  %1246 = vmatpush1.msra.mxu0 %v1151
  %1247 = vmatprep.subr.mxu0 0.0
  %1248 = vmatpush1.msra.mxu0 %v1152
  %1249 = vmatprep.subr.mxu0 0.0
  %1250 = vmatpush1.msra.mxu0 %v1153
  %1251 = vmatprep.subr.mxu0 0.0
  %1252 = vmatpush1.msra.mxu0 %v1154
  %1253 = vmatprep.subr.mxu0 0.0
  %1254 = vmatpush1.msra.mxu0 %v1155
  %1255 = vmatprep.subr.mxu0 0.0
  %1256 = vmatpush1.msra.mxu0 %v1156
  %1257 = vmatprep.subr.mxu0 0.0
  %1258 = vmatpush1.msra.mxu0 %v1157
  %1259 = vmatprep.subr.mxu0 0.0
  %1260 = vmatpush1.msra.mxu0 %v1158
  %1261 = vmatprep.subr.mxu0 0.0
  %1262 = vmatpush1.msra.mxu0 %v1159
  %1263 = vmatprep.mubr.f32.mxu0 %v1121
  %1264 = vmatmul.mubr.f32.gmra.mrb[0].mxu0 %v1120
  %v1265 = vpop.f32.mrb[0].mxu0
  %v1266 = vadd.f32 %v1197, %v1265
  %v1267 = vpop.f32.mrb[0].mxu0
  %1268 = vmatprep.mubr.f32.mxu0 %v1125
  %1269 = vmatmul.mubr.f32.gmra.mrb[0].mxu0 %v1124
  %v1270 = vpop.f32.mrb[0].mxu0
  %v1271 = vadd.f32 %v1197, %v1270
  %v1272 = vpop.f32.mrb[0].mxu0
  %1273 = vdwg.mxu0
  %1274 = vmatprep.subr.mxu0 0.0
  %1275 = vmatpush1.msra.mxu0 %v1160
  %1276 = vmatprep.subr.mxu0 0.0
  %1277 = vmatpush1.msra.mxu0 %v1161
  %1278 = vmatprep.subr.mxu0 0.0
  %1279 = vmatpush1.msra.mxu0 %v1162
  %1280 = vmatprep.subr.mxu0 0.0
  %1281 = vmatpush1.msra.mxu0 %v1163
  %1282 = vmatprep.subr.mxu0 0.0
  %1283 = vmatpush1.msra.mxu0 %v1164
  %1284 = vmatprep.subr.mxu0 0.0
  %1285 = vmatpush1.msra.mxu0 %v1165
  %1286 = vmatprep.subr.mxu0 0.0
  %1287 = vmatpush1.msra.mxu0 %v1166
  %1288 = vmatprep.subr.mxu0 0.0
  %1289 = vmatpush1.msra.mxu0 %v1167
  %1290 = vmatprep.subr.mxu0 0.0
  %1291 = vmatpush1.msra.mxu0 %v1168
  %1292 = vmatprep.subr.mxu0 0.0
  %1293 = vmatpush1.msra.mxu0 %v1169
  %1294 = vmatprep.subr.mxu0 0.0
  %1295 = vmatpush1.msra.mxu0 %v1170
  %1296 = vmatprep.subr.mxu0 0.0
  %1297 = vmatpush1.msra.mxu0 %v1171
  %1298 = vmatprep.subr.mxu0 0.0
  %1299 = vmatpush1.msra.mxu0 %v1172
  %1300 = vmatprep.subr.mxu0 0.0
  %1301 = vmatpush1.msra.mxu0 %v1173
  %1302 = vmatprep.subr.mxu0 0.0
  %1303 = vmatpush1.msra.mxu0 %v1174
  %1304 = vmatprep.subr.mxu0 0.0
  %1305 = vmatpush1.msra.mxu0 %v1175
  %1306 = vmatprep.subr.mxu0 0.0
  %1307 = vmatpush1.msra.mxu0 %v1176
  %1308 = vmatprep.subr.mxu0 0.0
  %1309 = vmatpush1.msra.mxu0 %v1177
  %1310 = vmatprep.subr.mxu0 0.0
  %1311 = vmatpush1.msra.mxu0 %v1178
  %1312 = vmatprep.subr.mxu0 0.0
  %1313 = vmatpush1.msra.mxu0 %v1179
  %1314 = vmatprep.subr.mxu0 0.0
  %1315 = vmatpush1.msra.mxu0 %v1180
  %1316 = vmatprep.subr.mxu0 0.0
  %1317 = vmatpush1.msra.mxu0 %v1181
  %1318 = vmatprep.subr.mxu0 0.0
  %1319 = vmatpush1.msra.mxu0 %v1182
  %1320 = vmatprep.subr.mxu0 0.0
  %1321 = vmatpush1.msra.mxu0 %v1183
  %1322 = vmatprep.subr.mxu0 0.0
  %1323 = vmatpush1.msra.mxu0 %v1184
  %1324 = vmatprep.subr.mxu0 0.0
  %1325 = vmatpush1.msra.mxu0 %v1185
  %1326 = vmatprep.subr.mxu0 0.0
  %1327 = vmatpush1.msra.mxu0 %v1186
  %1328 = vmatprep.subr.mxu0 0.0
  %1329 = vmatpush1.msra.mxu0 %v1187
  %1330 = vmatprep.subr.mxu0 0.0
  %1331 = vmatpush1.msra.mxu0 %v1188
  %1332 = vmatprep.subr.mxu0 0.0
  %1333 = vmatpush1.msra.mxu0 %v1189
  %1334 = vmatprep.subr.mxu0 0.0
  %1335 = vmatpush1.msra.mxu0 %v1190
  %1336 = vmatprep.subr.mxu0 0.0
  %1337 = vmatpush1.msra.mxu0 %v1191
  %1338 = vmatprep.mubr.f32.mxu0 %v1123
  %1339 = vmatmul.mubr.f32.gmra.mrb[0].mxu0 %v1122
  %v1340 = vpop.f32.mrb[0].mxu0
  %v1341 = vadd.f32 %v1266, %v1340
  %v1342 = vpop.f32.mrb[0].mxu0
  %1343 = vmatprep.mubr.f32.mxu0 %v1127
  %1344 = vmatmul.mubr.f32.gmra.mrb[0].mxu0 %v1126
  %v1345 = vpop.f32.mrb[0].mxu0
  %v1346 = vadd.f32 %v1271, %v1345
  %v1347 = vpop.f32.mrb[0].mxu0
  %1348 = vdwg.mxu0
  %v1349 = vlaneseq
  %v1350 = vand.u32 %v1349, 127
  %vm1351 = vcmp.ge.s32.totalorder %v1350, 20
  %v1352 = vmax.f32 %v1341, 0.0
  %v1353 = vmax.f32 %v1346, 0.0
  %v1354 = vsel %vm1351, %v1352, %v1341
  %v1355 = vsel %vm1351, %v1353, %v1346
  %1356 = vst [vmem:[%s5] sm:$0xff] %v1354
  %1357 = vst [vmem:[%s5 + $0x8] sm:$0xff] %v1355
  // Predicated region
  $region22: #{encoder_forward.1} parent=0 // pred_check
    _
  $region23: #{encoder_forward.1} parent=0 // pred_check_branch
    %1359 = sbr.rel (0) target = $region25
  $region24: #{encoder_forward.1} parent=0 // pred_region
    _
  $region25: #{encoder_forward.1} parent=0 // pred_fallthru
    _
  // Predicated region
  $region26: #{encoder_forward.1} parent=0 // pred_check
    _
  $region27: #{encoder_forward.1} parent=0 // pred_check_branch
    %1361 = sbr.rel (0) target = $region29
  $region28: #{encoder_forward.1} parent=0 // pred_region
    _
  $region29: #{encoder_forward.1} parent=0 // pred_fallthru
    _

</llo_original>
